<compile_context>
chip_gen: v7x
topology: tpu7x:2x2x1
jax: 0.10.0
libtpu: 0.0.40
codegen_flags: <defaults>
</compile_context>

<pallas_src>
import functools

import jax
import jax.numpy as jnp
from jax.experimental import pallas as pl
from jax.experimental.pallas import tpu as pltpu

EPS = 1e-5  # nn.GroupNorm default eps


def attention_block_kernel(x_ref, pool_ref, wq_ref, wk_ref, wv_ref,
                           bq_ref, bk_ref, bv_ref, wout_ref, bout_ref,
                           o_ref, q_scr, *, tq):
    tb, hw, c = x_ref.shape
    _, g = pool_ref.shape
    cs = c // g

    x = x_ref[...].astype(jnp.float32)                     # (TB, HW, C)
    pool = pool_ref[...]                                    # (C, G) one-hot f32

    # ---- GroupNorm, one-pass stats (biased variance, like torch) ----
    inv_n = 1.0 / (cs * hw)
    s1 = jnp.sum(x, axis=1)                                 # (TB, C)
    s2 = jnp.sum(x * x, axis=1)                             # (TB, C)
    mean_g = jax.lax.dot_general(s1, pool, (((1,), (0,)), ((), ())),
                                 preferred_element_type=jnp.float32) * inv_n
    ex2_g = jax.lax.dot_general(s2, pool, (((1,), (0,)), ((), ())),
                                preferred_element_type=jnp.float32) * inv_n
    inv_g = jax.lax.rsqrt(ex2_g - mean_g * mean_g + EPS)    # (TB, G)
    mean_c = jax.lax.dot_general(mean_g, pool, (((1,), (1,)), ((), ())),
                                 preferred_element_type=jnp.float32)   # (TB, C)
    inv_c = jax.lax.dot_general(inv_g, pool, (((1,), (1,)), ((), ())),
                                preferred_element_type=jnp.float32)    # (TB, C)
    # GN affine (gamma/beta) and the softmax 1/sqrt(C) scale are folded into
    # the qkv conv weights/biases in the wrapper.
    xn = ((x - mean_c[:, None, :]) * inv_c[:, None, :]).astype(jnp.bfloat16)
    xn2 = xn.reshape(tb * hw, c)           # flatten: MXU sees M = TB*HW rows

    # ---- 1x1 qkv conv: three bf16 matmuls, f32 accumulation, bf16 results ----
    def conv(w_ref, b_ref):
        y = jax.lax.dot_general(xn2, w_ref[...], (((1,), (0,)), ((), ())),
                                preferred_element_type=jnp.float32) + b_ref[...]
        return y.astype(jnp.bfloat16).reshape(tb, hw, c)

    q_scr[...] = conv(wq_ref, bq_ref)       # scaled q, re-read per query tile
    k = conv(wk_ref, bk_ref)                # (TB, HW, C) bf16
    v = conv(wv_ref, bv_ref)                # (TB, HW, C) bf16

    wout = wout_ref[...]                    # (C, C) bf16
    bout = bout_ref[...]                    # (1, C) f32

    n_q_tiles = hw // tq

    def q_tile_body(i, carry):
        start = pl.multiple_of(i * tq, tq)
        q_t = q_scr[:, pl.ds(start, tq), :]                  # (TB, TQ, C) bf16
        # scores: contract channel axes of q and k (no explicit k transpose)
        s = jax.lax.dot_general(q_t, k, (((2,), (2,)), ((0,), (0,))),
                                preferred_element_type=jnp.float32)  # (TB,TQ,HW)
        s = s - jnp.max(s, axis=-1, keepdims=True)
        p = jnp.exp(s)
        denom = jnp.sum(p, axis=-1, keepdims=True)            # (TB, TQ, 1)
        o_un = jax.lax.dot_general(p.astype(jnp.bfloat16), v,
                                   (((2,), (1,)), ((0,), (0,))),
                                   preferred_element_type=jnp.float32)  # (TB,TQ,C)
        # deferred softmax normalization (reciprocal on the EUP)
        attn = (o_un * pl.reciprocal(denom, approx=True)).astype(jnp.bfloat16)
        # ---- 1x1 out conv + residual, flattened to M = TB*TQ rows ----
        proj = jax.lax.dot_general(attn.reshape(tb * tq, c), wout,
                                   (((1,), (0,)), ((), ())),
                                   preferred_element_type=jnp.float32) + bout
        x_res = x_ref[:, pl.ds(start, tq), :].astype(jnp.float32)
        o_ref[:, pl.ds(start, tq), :] = (proj.reshape(tb, tq, c)
                                         + x_res).astype(o_ref.dtype)
        return carry

    jax.lax.fori_loop(0, n_q_tiles, q_tile_body, 0, unroll=n_q_tiles <= 2)


def _tpu_info():
    """(vmem_capacity_bytes, device_kind) with conservative fallbacks."""
    kind = ""
    try:
        kind = jax.devices()[0].device_kind.lower()
    except Exception:
        pass
    cap = None
    try:
        cap = int(pltpu.get_tpu_info().vmem_capacity_bytes)
    except Exception:
        cap = None
    if not cap or cap <= 0:
        if "v7" in kind or "7x" in kind:
            cap = 64 * 1024 * 1024
        elif "v2" in kind or "v3" in kind:
            cap = 16 * 1024 * 1024
        elif kind:
            cap = 128 * 1024 * 1024      # v4 / v5e / v5p / v6e
        else:
            cap = 64 * 1024 * 1024       # unknown: assume the smallest modern part
    return cap, kind


def _estimate_vmem_bytes(tb, tq, hw, c, g):
    """Rough per-grid-step live-set estimate (includes pipeline double-buffers)."""
    blk = tb * hw * c
    io = 2 * blk * 4 * 2                           # x + out f32 blocks, double-buffered
    tmp = blk * (2 + 2 + 2 + 2) + blk * 4          # xn/q/k/v bf16 + one f32 matmul result
    tile = 2 * tb * tq * hw * 4 + 2 * tb * tq * c * 4   # scores+exp, attn+proj tiles
    const = 2 * (4 * c * c * 2 + c * g * 4 + 4 * c * 4)  # weights/pool/biases (x2 buffers)
    return io + tmp + tile + const


def _pick_tq(hw, pref):
    """Query-tile rows: bounds the (TB, TQ, HW) scores tile in VMEM."""
    if hw <= pref:
        return hw
    for cand in (pref, 256, 128, 64, 32, 16, 8):
        if cand <= hw and hw % cand == 0:
            return cand
    return hw


def _pick_tiles(b, hw, c, g, tq, budget, min_grid_steps):
    """Choose (TB, TQ) so the estimated VMEM footprint fits the budget."""
    # Shrink the query tile first if even a single sample does not fit.
    while (_estimate_vmem_bytes(1, tq, hw, c, g) > budget and tq > 8
           and tq % 2 == 0 and hw % (tq // 2) == 0):
        tq //= 2
    tb_cap = max(1, b // min_grid_steps)
    tb = 1
    for cand in range(1, tb_cap + 1):
        if b % cand == 0 and _estimate_vmem_bytes(cand, tq, hw, c, g) <= budget:
            tb = cand
    return tb, tq


def attention_block(x_nchw, params, num_groups):
    """x_nchw: (B, C, H, W) float32. Returns (B, C, H, W)."""
    b, c, h, w = x_nchw.shape
    assert c % num_groups == 0
    g = num_groups
    cs = c // g
    hw = h * w

    # NCHW -> (B, HW, C).
    # TODO(synk): keep activations channel-last across the UNet (or fold an
    # XLU transpose of (C, HW) blocks into the kernel) so these two HBM
    # round-trip transposes disappear; the fused block is near the HBM
    # roofline on v6e/v7x and they roughly double its memory traffic.
    x_seq = jnp.transpose(x_nchw, (0, 2, 3, 1)).reshape(b, hw, c)

    gamma = params["gamma"].astype(jnp.float32)
    beta = params["beta"].astype(jnp.float32)
    w_oc = params["wqkv_oc"].astype(jnp.float32)       # (3C, C): rows = q, k, v
    b_oc = params["bqkv"].astype(jnp.float32)          # (3C,)
    scale = float(c) ** -0.5

    def fold(w_rows, b_rows, extra=1.0):
        # (xn*gamma + beta) @ W^T + b == xn @ (gamma[:,None]*W^T) + (beta@W^T + b)
        wt = w_rows.T                                    # (C_in, C_out)
        w_f = (gamma[:, None] * wt) * extra
        b_f = (beta @ wt + b_rows) * extra
        return w_f.astype(jnp.bfloat16), b_f.reshape(1, c).astype(jnp.float32)

    wq, bq = fold(w_oc[:c], b_oc[:c], scale)            # 1/sqrt(C) folded into q
    wk, bk = fold(w_oc[c:2 * c], b_oc[c:2 * c])
    wv, bv = fold(w_oc[2 * c:], b_oc[2 * c:])
    wout = params["wout_oc"].astype(jnp.float32).T.astype(jnp.bfloat16)   # (C, C)
    bout = params["bout"].astype(jnp.float32).reshape(1, c)

    # Channel -> group one-hot pooling matrix, built once (not per grid step).
    # TODO(synk): for C < 128, zero-pad the channel (lane) axis to 128 in the
    # weights/pool so all q/k/v tiles and output stores are lane-dense.
    pool = (jnp.arange(c, dtype=jnp.int32)[:, None] // cs
            == jnp.arange(g, dtype=jnp.int32)[None, :]).astype(jnp.float32)  # (C, G)

    vmem_cap, kind = _tpu_info()
    # Leave headroom for Mosaic internal scratch: ~48 MiB limit on v7x,
    # ~96 MiB on 128-MiB parts; tiles are sized to fit (not merely clamped).
    vmem_limit = int(min(0.75 * vmem_cap, 100 * 1024 * 1024))
    budget = (vmem_limit * 3) // 5

    is_v5e = ("v5 lite" in kind) or ("v5e" in kind) or ("v5litepod" in kind)
    two_core = ("v7" in kind) or ("7x" in kind)
    tq0 = _pick_tq(hw, 128 if is_v5e else 256)           # 4x128 MXU on v5e
    min_steps = 2 if (two_core and b >= 2) else 1        # keep both v7x TCs busy
    tb, tq = _pick_tiles(b, hw, c, g, tq0, budget, min_steps)
    assert b % tb == 0, (b, tb)
    assert hw % tq == 0, (hw, tq)

    grid = (b // tb,)
    kernel = functools.partial(attention_block_kernel, tq=tq)
    const2 = lambda i: (0, 0)

    # NOTE: the constant operands (pool / weights / biases) could be
    # single-buffered (pipeline_mode=pl.Buffered(1)) to shave ~2x their VMEM;
    # left at the default here and accounted for in _estimate_vmem_bytes.
    out_seq = pl.pallas_call(
        kernel,
        out_shape=jax.ShapeDtypeStruct((b, hw, c), x_seq.dtype),
        grid_spec=pltpu.PrefetchScalarGridSpec(
            num_scalar_prefetch=0,
            grid=grid,
            in_specs=[
                pl.BlockSpec((tb, hw, c), lambda i: (i, 0, 0)),   # x
                pl.BlockSpec((c, g), const2),                     # group pool
                pl.BlockSpec((c, c), const2),                     # W_q (GN + scale folded)
                pl.BlockSpec((c, c), const2),                     # W_k (GN folded)
                pl.BlockSpec((c, c), const2),                     # W_v (GN folded)
                pl.BlockSpec((1, c), const2),                     # b_q
                pl.BlockSpec((1, c), const2),                     # b_k
                pl.BlockSpec((1, c), const2),                     # b_v
                pl.BlockSpec((c, c), const2),                     # W_out
                pl.BlockSpec((1, c), const2),                     # b_out
            ],
            out_specs=pl.BlockSpec((tb, hw, c), lambda i: (i, 0, 0)),
            scratch_shapes=[pltpu.VMEM((tb, hw, c), jnp.bfloat16)],  # scaled q
        ),
        compiler_params=pltpu.CompilerParams(
            dimension_semantics=("parallel",),
            vmem_limit_bytes=vmem_limit),
    )(x_seq, pool, wq, wk, wv, bq, bk, bv, wout, bout)

    # TODO(synk): for B == 1 sampling on v7x, add a second "parallel" grid axis
    # over query tiles (with k/v production hoisted) so both TensorCores run.

    # (B, HW, C) -> NCHW
    return jnp.transpose(out_seq.reshape(b, h, w, c), (0, 3, 1, 2))


def reference_attention_block(x, params, num_groups):
    """Pure-JAX reference matching the PyTorch forward exactly (f32)."""
    b, c, h, w = x.shape
    cs = c // num_groups
    xg = x.reshape(b, num_groups, cs, h, w)
    mean = xg.mean(axis=(2, 3, 4), keepdims=True)
    var = ((xg - mean) ** 2).mean(axis=(2, 3, 4), keepdims=True)
    xn = ((xg - mean) / jnp.sqrt(var + EPS)).reshape(b, c, h, w)
    xn = xn * params["gamma"][None, :, None, None] + params["beta"][None, :, None, None]

    qkv = jnp.einsum("bchw,oc->bohw", xn, params["wqkv_oc"]) + params["bqkv"][None, :, None, None]
    q, k, v = jnp.split(qkv, 3, axis=1)
    q = q.transpose(0, 2, 3, 1).reshape(b, h * w, c)
    k = k.reshape(b, c, h * w)
    v = v.transpose(0, 2, 3, 1).reshape(b, h * w, c)
    dots = jnp.einsum("bic,bcj->bij", q, k) * (c ** -0.5)
    attn = jax.nn.softmax(dots, axis=-1)
    out = jnp.einsum("bij,bjc->bic", attn, v)
    out = out.reshape(b, h, w, c).transpose(0, 3, 1, 2)
    out = jnp.einsum("bchw,oc->bohw", out, params["wout_oc"]) + params["bout"][None, :, None, None]
    return out + x


if __name__ == "__main__":
    # Small shapes consistent with the module: C must be divisible by num_groups;
    # C=128 keeps all channel tiles lane-dense.
    B, C, H, W = 2, 128, 8, 8
    NUM_GROUPS = 32  # module default

    key = jax.random.PRNGKey(0)
    kx, kg, kb, kw1, kb1, kw2, kb2 = jax.random.split(key, 7)

    x = jax.random.normal(kx, (B, C, H, W), dtype=jnp.float32)

    params = {
        "gamma":   1.0 + 0.1 * jax.random.normal(kg, (C,), dtype=jnp.float32),
        "beta":    0.1 * jax.random.normal(kb, (C,), dtype=jnp.float32),
        # Conv2d 1x1 weights stored as (out_channels, in_channels)
        "wqkv_oc": 0.1 * jax.random.normal(kw1, (3 * C, C), dtype=jnp.float32),
        "bqkv":    0.1 * jax.random.normal(kb1, (3 * C,), dtype=jnp.float32),
        "wout_oc": 0.1 * jax.random.normal(kw2, (C, C), dtype=jnp.float32),
        "bout":    0.1 * jax.random.normal(kb2, (C,), dtype=jnp.float32),
    }

    out = jax.block_until_ready(attention_block(x, params, NUM_GROUPS))
    ref = jax.block_until_ready(reference_attention_block(x, params, NUM_GROUPS))
    assert out.shape == (B, C, H, W)
    max_diff = float(jnp.max(jnp.abs(out - ref)))
    # bf16 MXU matmuls + approximate (EUP) reciprocal -> relaxed tolerance
    assert jnp.allclose(out, ref, atol=4e-2, rtol=4e-2), f"max abs diff = {max_diff}"

    print("KERNEL_OK")
</pallas_src>

<mosaic_0001>
module attributes {stable_mosaic.version = 11 : i64} {
  func.func @attention_block_kernel(%arg0: i32, %arg1: memref<2x64x128xf32, #tpu.memory_space<vmem>>, %arg2: memref<128x32xf32, #tpu.memory_space<vmem>>, %arg3: memref<128x128xbf16, #tpu.memory_space<vmem>>, %arg4: memref<128x128xbf16, #tpu.memory_space<vmem>>, %arg5: memref<128x128xbf16, #tpu.memory_space<vmem>>, %arg6: memref<1x128xf32, #tpu.memory_space<vmem>>, %arg7: memref<1x128xf32, #tpu.memory_space<vmem>>, %arg8: memref<1x128xf32, #tpu.memory_space<vmem>>, %arg9: memref<128x128xbf16, #tpu.memory_space<vmem>>, %arg10: memref<1x128xf32, #tpu.memory_space<vmem>>, %arg11: memref<2x64x128xf32, #tpu.memory_space<vmem>>, %arg12: memref<2x64x128xbf16, #tpu.memory_space<vmem>>) attributes {dimension_semantics = [#tpu.dimension_semantics<parallel>], iteration_bounds = array<i64: 1>, scalar_prefetch = 0 : i64, scratch_operands = 1 : i64, tpu.core_type = #tpu.core_type<tc>, window_params = [{transform_indices = @transform_0, window_bounds = array<i64: 2, 64, 128>}, {pipeline_mode = #tpu.pipeline_mode<synchronous>, transform_indices = @transform_1, window_bounds = array<i64: 128, 32>}, {pipeline_mode = #tpu.pipeline_mode<synchronous>, transform_indices = @transform_2, window_bounds = array<i64: 128, 128>}, {pipeline_mode = #tpu.pipeline_mode<synchronous>, transform_indices = @transform_3, window_bounds = array<i64: 128, 128>}, {pipeline_mode = #tpu.pipeline_mode<synchronous>, transform_indices = @transform_4, window_bounds = array<i64: 128, 128>}, {pipeline_mode = #tpu.pipeline_mode<synchronous>, transform_indices = @transform_5, window_bounds = array<i64: 1, 128>}, {pipeline_mode = #tpu.pipeline_mode<synchronous>, transform_indices = @transform_6, window_bounds = array<i64: 1, 128>}, {pipeline_mode = #tpu.pipeline_mode<synchronous>, transform_indices = @transform_7, window_bounds = array<i64: 1, 128>}, {pipeline_mode = #tpu.pipeline_mode<synchronous>, transform_indices = @transform_8, window_bounds = array<i64: 128, 128>}, {pipeline_mode = #tpu.pipeline_mode<synchronous>, transform_indices = @transform_9, window_bounds = array<i64: 1, 128>}, {transform_indices = @transform_10, window_bounds = array<i64: 2, 64, 128>}]} {
    %c0 = arith.constant 0 : index
    %c0_0 = arith.constant 0 : index
    %c0_1 = arith.constant 0 : index
    %0 = vector.load %arg1[%c0, %c0_0, %c0_1] : memref<2x64x128xf32, #tpu.memory_space<vmem>>, vector<2x64x128xf32>
    %c0_2 = arith.constant 0 : index
    %c0_3 = arith.constant 0 : index
    %1 = vector.load %arg2[%c0_2, %c0_3] : memref<128x32xf32, #tpu.memory_space<vmem>>, vector<128x32xf32>
    %cst = arith.constant dense<0.000000e+00> : vector<2x128xf32>
    %2 = vector.multi_reduction <add>, %0, %cst [1] : vector<2x64x128xf32> to vector<2x128xf32>
    %3 = arith.mulf %0, %0 : vector<2x64x128xf32>
    %cst_4 = arith.constant dense<0.000000e+00> : vector<2x128xf32>
    %4 = vector.multi_reduction <add>, %3, %cst_4 [1] : vector<2x64x128xf32> to vector<2x128xf32>
    %cst_5 = arith.constant dense<0.000000e+00> : vector<2x32xf32>
    %5 = tpu.matmul %2, %1, %cst_5 {dimension_numbers = #tpu.dot_dimension_numbers<[1], [0], [0], [1], [0, 0, 1, 1], [], []>} : vector<2x128xf32>, vector<128x32xf32>, vector<2x32xf32> -> vector<2x32xf32>
    %cst_6 = arith.constant 3.906250e-03 : f32
    %6 = vector.broadcast %cst_6 : f32 to vector<2x32xf32>
    %7 = arith.mulf %5, %6 : vector<2x32xf32>
    %cst_7 = arith.constant dense<0.000000e+00> : vector<2x32xf32>
    %8 = tpu.matmul %4, %1, %cst_7 {dimension_numbers = #tpu.dot_dimension_numbers<[1], [0], [0], [1], [0, 0, 1, 1], [], []>} : vector<2x128xf32>, vector<128x32xf32>, vector<2x32xf32> -> vector<2x32xf32>
    %cst_8 = arith.constant 3.906250e-03 : f32
    %9 = vector.broadcast %cst_8 : f32 to vector<2x32xf32>
    %10 = arith.mulf %8, %9 : vector<2x32xf32>
    %11 = arith.mulf %7, %7 : vector<2x32xf32>
    %12 = arith.subf %10, %11 : vector<2x32xf32>
    %cst_9 = arith.constant 9.99999974E-6 : f32
    %13 = vector.broadcast %cst_9 : f32 to vector<2x32xf32>
    %14 = arith.addf %12, %13 : vector<2x32xf32>
    %15 = math.rsqrt %14 : vector<2x32xf32>
    %cst_10 = arith.constant dense<0.000000e+00> : vector<2x128xf32>
    %16 = tpu.matmul %7, %1, %cst_10 {dimension_numbers = #tpu.dot_dimension_numbers<[1], [1], [0], [0], [0, 0, 1, 0], [], []>} : vector<2x32xf32>, vector<128x32xf32>, vector<2x128xf32> -> vector<2x128xf32>
    %cst_11 = arith.constant dense<0.000000e+00> : vector<2x128xf32>
    %17 = tpu.matmul %15, %1, %cst_11 {dimension_numbers = #tpu.dot_dimension_numbers<[1], [1], [0], [0], [0, 0, 1, 0], [], []>} : vector<2x32xf32>, vector<128x32xf32>, vector<2x128xf32> -> vector<2x128xf32>
    %18 = vector.shape_cast %16 : vector<2x128xf32> to vector<2x1x128xf32>
    %19 = vector.broadcast %18 : vector<2x1x128xf32> to vector<2x64x128xf32>
    %20 = arith.subf %0, %19 : vector<2x64x128xf32>
    %21 = vector.shape_cast %17 : vector<2x128xf32> to vector<2x1x128xf32>
    %22 = vector.broadcast %21 : vector<2x1x128xf32> to vector<2x64x128xf32>
    %23 = arith.mulf %20, %22 : vector<2x64x128xf32>
    %24 = arith.truncf %23 : vector<2x64x128xf32> to vector<2x64x128xbf16>
    %25 = vector.shape_cast %24 : vector<2x64x128xbf16> to vector<128x128xbf16>
    %c0_12 = arith.constant 0 : index
    %c0_13 = arith.constant 0 : index
    %26 = vector.load %arg3[%c0_12, %c0_13] : memref<128x128xbf16, #tpu.memory_space<vmem>>, vector<128x128xbf16>
    %cst_14 = arith.constant dense<0.000000e+00> : vector<128x128xf32>
    %27 = tpu.matmul %25, %26, %cst_14 {dimension_numbers = #tpu.dot_dimension_numbers<[1], [0], [0], [1], [0, 0, 1, 1], [], []>} : vector<128x128xbf16>, vector<128x128xbf16>, vector<128x128xf32> -> vector<128x128xf32>
    %c0_15 = arith.constant 0 : index
    %c0_16 = arith.constant 0 : index
    %28 = vector.load %arg6[%c0_15, %c0_16] : memref<1x128xf32, #tpu.memory_space<vmem>>, vector<1x128xf32>
    %29 = vector.broadcast %28 : vector<1x128xf32> to vector<128x128xf32>
    %30 = arith.addf %27, %29 : vector<128x128xf32>
    %31 = arith.truncf %30 : vector<128x128xf32> to vector<128x128xbf16>
    %32 = vector.shape_cast %31 : vector<128x128xbf16> to vector<2x64x128xbf16>
    %c0_17 = arith.constant 0 : index
    %c0_18 = arith.constant 0 : index
    %c0_19 = arith.constant 0 : index
    %33 = vector.load %arg12[%c0_17, %c0_18, %c0_19] : memref<2x64x128xbf16, #tpu.memory_space<vmem>>, vector<2x64x128xbf16>
    tpu.vector_store %arg12[%c0_17, %c0_18, %c0_19], %32 {strides = array<i32>} : memref<2x64x128xbf16, #tpu.memory_space<vmem>>, vector<2x64x128xbf16>,
    %c0_20 = arith.constant 0 : index
    %c0_21 = arith.constant 0 : index
    %34 = vector.load %arg4[%c0_20, %c0_21] : memref<128x128xbf16, #tpu.memory_space<vmem>>, vector<128x128xbf16>
    %cst_22 = arith.constant dense<0.000000e+00> : vector<128x128xf32>
    %35 = tpu.matmul %25, %34, %cst_22 {dimension_numbers = #tpu.dot_dimension_numbers<[1], [0], [0], [1], [0, 0, 1, 1], [], []>} : vector<128x128xbf16>, vector<128x128xbf16>, vector<128x128xf32> -> vector<128x128xf32>
    %c0_23 = arith.constant 0 : index
    %c0_24 = arith.constant 0 : index
    %36 = vector.load %arg7[%c0_23, %c0_24] : memref<1x128xf32, #tpu.memory_space<vmem>>, vector<1x128xf32>
    %37 = vector.broadcast %36 : vector<1x128xf32> to vector<128x128xf32>
    %38 = arith.addf %35, %37 : vector<128x128xf32>
    %39 = arith.truncf %38 : vector<128x128xf32> to vector<128x128xbf16>
    %40 = vector.shape_cast %39 : vector<128x128xbf16> to vector<2x64x128xbf16>
    %c0_25 = arith.constant 0 : index
    %c0_26 = arith.constant 0 : index
    %41 = vector.load %arg5[%c0_25, %c0_26] : memref<128x128xbf16, #tpu.memory_space<vmem>>, vector<128x128xbf16>
    %cst_27 = arith.constant dense<0.000000e+00> : vector<128x128xf32>
    %42 = tpu.matmul %25, %41, %cst_27 {dimension_numbers = #tpu.dot_dimension_numbers<[1], [0], [0], [1], [0, 0, 1, 1], [], []>} : vector<128x128xbf16>, vector<128x128xbf16>, vector<128x128xf32> -> vector<128x128xf32>
    %c0_28 = arith.constant 0 : index
    %c0_29 = arith.constant 0 : index
    %43 = vector.load %arg8[%c0_28, %c0_29] : memref<1x128xf32, #tpu.memory_space<vmem>>, vector<1x128xf32>
    %44 = vector.broadcast %43 : vector<1x128xf32> to vector<128x128xf32>
    %45 = arith.addf %42, %44 : vector<128x128xf32>
    %46 = arith.truncf %45 : vector<128x128xf32> to vector<128x128xbf16>
    %47 = vector.shape_cast %46 : vector<128x128xbf16> to vector<2x64x128xbf16>
    %c0_30 = arith.constant 0 : index
    %c0_31 = arith.constant 0 : index
    %48 = vector.load %arg9[%c0_30, %c0_31] : memref<128x128xbf16, #tpu.memory_space<vmem>>, vector<128x128xbf16>
    %c0_32 = arith.constant 0 : index
    %c0_33 = arith.constant 0 : index
    %49 = vector.load %arg10[%c0_32, %c0_33] : memref<1x128xf32, #tpu.memory_space<vmem>>, vector<1x128xf32>
    %c0_i32 = arith.constant 0 : i32
    %c64_i32 = arith.constant 64 : i32
    %50 = arith.muli %c0_i32, %c64_i32 : i32
    %51 = tpu.assume_multiple %50, 64 : i32
    %c0_34 = arith.constant 0 : index
    %52 = arith.index_cast %51 : i32 to index
    %c0_35 = arith.constant 0 : index
    %53 = vector.load %arg12[%c0_34, %52, %c0_35] : memref<2x64x128xbf16, #tpu.memory_space<vmem>>, vector<2x64x128xbf16>
    %cst_36 = arith.constant dense<0.000000e+00> : vector<2x64x64xf32>
    %54 = tpu.matmul %53, %40, %cst_36 {dimension_numbers = #tpu.dot_dimension_numbers<[2], [2], [1], [1], [0, 0, 0, 1, 1, 1], [0], [0]>} : vector<2x64x128xbf16>, vector<2x64x128xbf16>, vector<2x64x64xf32> -> vector<2x64x64xf32>
    %cst_37 = arith.constant dense<0xFF800000> : vector<2x64xf32>
    %55 = vector.multi_reduction <maximumf>, %54, %cst_37 [2] : vector<2x64x64xf32> to vector<2x64xf32>
    %56 = vector.shape_cast %55 : vector<2x64xf32> to vector<2x64x1xf32>
    %57 = vector.broadcast %56 : vector<2x64x1xf32> to vector<2x64x64xf32>
    %58 = arith.subf %54, %57 : vector<2x64x64xf32>
    %59 = math.exp %58 : vector<2x64x64xf32>
    %cst_38 = arith.constant dense<0.000000e+00> : vector<2x64xf32>
    %60 = vector.multi_reduction <add>, %59, %cst_38 [2] : vector<2x64x64xf32> to vector<2x64xf32>
    %61 = vector.shape_cast %60 : vector<2x64xf32> to vector<2x64x1xf32>
    %62 = arith.truncf %59 : vector<2x64x64xf32> to vector<2x64x64xbf16>
    %cst_39 = arith.constant dense<0.000000e+00> : vector<2x64x128xf32>
    %63 = tpu.matmul %62, %47, %cst_39 {dimension_numbers = #tpu.dot_dimension_numbers<[2], [1], [1], [2], [0, 0, 0, 1, 1, 2], [0], [0]>} : vector<2x64x64xbf16>, vector<2x64x128xbf16>, vector<2x64x128xf32> -> vector<2x64x128xf32>
    %64 = tpu.reciprocal %61 {approx = true} : vector<2x64x1xf32> -> vector<2x64x1xf32>
    %65 = vector.broadcast %64 : vector<2x64x1xf32> to vector<2x64x128xf32>
    %66 = arith.mulf %63, %65 : vector<2x64x128xf32>
    %67 = arith.truncf %66 : vector<2x64x128xf32> to vector<2x64x128xbf16>
    %68 = vector.shape_cast %67 : vector<2x64x128xbf16> to vector<128x128xbf16>
    %cst_40 = arith.constant dense<0.000000e+00> : vector<128x128xf32>
    %69 = tpu.matmul %68, %48, %cst_40 {dimension_numbers = #tpu.dot_dimension_numbers<[1], [0], [0], [1], [0, 0, 1, 1], [], []>} : vector<128x128xbf16>, vector<128x128xbf16>, vector<128x128xf32> -> vector<128x128xf32>
    %70 = vector.broadcast %49 : vector<1x128xf32> to vector<128x128xf32>
    %71 = arith.addf %69, %70 : vector<128x128xf32>
    %c0_41 = arith.constant 0 : index
    %72 = arith.index_cast %51 : i32 to index
    %c0_42 = arith.constant 0 : index
    %73 = vector.load %arg1[%c0_41, %72, %c0_42] : memref<2x64x128xf32, #tpu.memory_space<vmem>>, vector<2x64x128xf32>
    %74 = vector.shape_cast %71 : vector<128x128xf32> to vector<2x64x128xf32>
    %75 = arith.addf %74, %73 : vector<2x64x128xf32>
    %c0_43 = arith.constant 0 : index
    %76 = arith.index_cast %51 : i32 to index
    %c0_44 = arith.constant 0 : index
    %77 = vector.load %arg11[%c0_43, %76, %c0_44] : memref<2x64x128xf32, #tpu.memory_space<vmem>>, vector<2x64x128xf32>
    tpu.vector_store %arg11[%c0_43, %76, %c0_44], %75 {strides = array<i32>} : memref<2x64x128xf32, #tpu.memory_space<vmem>>, vector<2x64x128xf32>,
    %c1_i32 = arith.constant 1 : i32
    return
  }
  func.func @transform_0(%arg0: i32) -> (i32, i32, i32) {
    %c0_i32 = arith.constant 0 : i32
    %c0_i32_0 = arith.constant 0 : i32
    %c0_i32_1 = arith.constant 0 : i32
    return %arg0, %c0_i32, %c0_i32_0 : i32, i32, i32
  }
  func.func @transform_1(%arg0: i32) -> (i32, i32) {
    %c0_i32 = arith.constant 0 : i32
    %c0_i32_0 = arith.constant 0 : i32
    %c0_i32_1 = arith.constant 0 : i32
    return %c0_i32, %c0_i32_0 : i32, i32
  }
  func.func @transform_2(%arg0: i32) -> (i32, i32) {
    %c0_i32 = arith.constant 0 : i32
    %c0_i32_0 = arith.constant 0 : i32
    %c0_i32_1 = arith.constant 0 : i32
    return %c0_i32, %c0_i32_0 : i32, i32
  }
  func.func @transform_3(%arg0: i32) -> (i32, i32) {
    %c0_i32 = arith.constant 0 : i32
    %c0_i32_0 = arith.constant 0 : i32
    %c0_i32_1 = arith.constant 0 : i32
    return %c0_i32, %c0_i32_0 : i32, i32
  }
  func.func @transform_4(%arg0: i32) -> (i32, i32) {
    %c0_i32 = arith.constant 0 : i32
    %c0_i32_0 = arith.constant 0 : i32
    %c0_i32_1 = arith.constant 0 : i32
    return %c0_i32, %c0_i32_0 : i32, i32
  }
  func.func @transform_5(%arg0: i32) -> (i32, i32) {
    %c0_i32 = arith.constant 0 : i32
    %c0_i32_0 = arith.constant 0 : i32
    %c0_i32_1 = arith.constant 0 : i32
    return %c0_i32, %c0_i32_0 : i32, i32
  }
  func.func @transform_6(%arg0: i32) -> (i32, i32) {
    %c0_i32 = arith.constant 0 : i32
    %c0_i32_0 = arith.constant 0 : i32
    %c0_i32_1 = arith.constant 0 : i32
    return %c0_i32, %c0_i32_0 : i32, i32
  }
  func.func @transform_7(%arg0: i32) -> (i32, i32) {
    %c0_i32 = arith.constant 0 : i32
    %c0_i32_0 = arith.constant 0 : i32
    %c0_i32_1 = arith.constant 0 : i32
    return %c0_i32, %c0_i32_0 : i32, i32
  }
  func.func @transform_8(%arg0: i32) -> (i32, i32) {
    %c0_i32 = arith.constant 0 : i32
    %c0_i32_0 = arith.constant 0 : i32
    %c0_i32_1 = arith.constant 0 : i32
    return %c0_i32, %c0_i32_0 : i32, i32
  }
  func.func @transform_9(%arg0: i32) -> (i32, i32) {
    %c0_i32 = arith.constant 0 : i32
    %c0_i32_0 = arith.constant 0 : i32
    %c0_i32_1 = arith.constant 0 : i32
    return %c0_i32, %c0_i32_0 : i32, i32
  }
  func.func @transform_10(%arg0: i32) -> (i32, i32, i32) {
    %c0_i32 = arith.constant 0 : i32
    %c0_i32_0 = arith.constant 0 : i32
    %c0_i32_1 = arith.constant 0 : i32
    return %arg0, %c0_i32, %c0_i32_0 : i32, i32, i32
  }
}

</mosaic_0001>

<llo_original>
// kernel: tpu_custom_call.1
$region0: #{tpu_custom_call.1}
  #allocation0 [shape = 'u32[]', space=smem, size = 0x4, offset = 0x4, fixed_abs, tag = 'smem constant byte address 0x4 - core index']
  #allocation1 [shape = 'u32[144,128]{1,0:T(1,128)}', space=vmem, size = 0x12000, scoped, tag = 'internal scratch']
  #allocation2 [shape = 'bf16[2,64,128]{2,1,0:T(16,128)(2,1)}', space=vmem, size = 0x8000, scoped, tag = 'scratch operand']
  %s0 = inlined_call_operand.hbm [shape: f32[2,64,128], index: 0, kind: input, shape index: {}]
  %s1 = inlined_call_operand.hbm [shape: f32[128,32], index: 1, kind: input, shape index: {}]
  %s2 = inlined_call_operand.hbm [shape: bf16[128,128], index: 2, kind: input, shape index: {}]
  %s3 = inlined_call_operand.hbm [shape: bf16[128,128], index: 3, kind: input, shape index: {}]
  %s4 = inlined_call_operand.hbm [shape: bf16[128,128], index: 4, kind: input, shape index: {}]
  %s5 = inlined_call_operand.hbm [shape: f32[1,128], index: 5, kind: input, shape index: {}]
  %s6 = inlined_call_operand.hbm [shape: f32[1,128], index: 6, kind: input, shape index: {}]
  %s7 = inlined_call_operand.hbm [shape: f32[1,128], index: 7, kind: input, shape index: {}]
  %s8 = inlined_call_operand.hbm [shape: bf16[128,128], index: 8, kind: input, shape index: {}]
  %s9 = inlined_call_operand.hbm [shape: f32[1,128], index: 9, kind: input, shape index: {}]
  %s10 = inlined_call_operand.hbm [shape: f32[2,64,128], index: 10, kind: output, shape index: {}]
  %s11 = sld [smem:[#allocation0]]
  $region90: #{tpu_custom_call.1} parent=0
    _
  %s13 = ssub.s32 1, %s11
  %s14 = scalar_select 0, %s13, %s11
  $region1: #{tpu_custom_call.1} parent=0
    #allocation3 [shape = 'u8[65536]{0}', space=vmem, size = 0x10000, scoped, tag = 'input window, operand 0, single buffered']
    #allocation4 [shape = 's32[1]{0}', space=sflag, size = 0x4, scoped, tag = 'scoped memory for tpu_custom_call.1']
    #allocation5 [shape = 's32[1]{0}', space=sflag, size = 0x4, scoped, tag = 'scoped memory for tpu_custom_call.1']
    #allocation6 [shape = 'u8[65536]{0}', space=vmem, size = 0x10000, scoped, tag = 'input window, operand 1, single buffered']
    #allocation7 [shape = 's32[1]{0}', space=sflag, size = 0x4, scoped, tag = 'scoped memory for tpu_custom_call.1']
    #allocation8 [shape = 'u8[32768]{0}', space=vmem, size = 0x8000, scoped, tag = 'input window, operand 2, single buffered']
    #allocation9 [shape = 'u8[32768]{0}', space=vmem, size = 0x8000, scoped, tag = 'input window, operand 3, single buffered']
    #allocation10 [shape = 's32[1]{0}', space=sflag, size = 0x4, scoped, tag = 'scoped memory for tpu_custom_call.1']
    #allocation11 [shape = 'u8[32768]{0}', space=vmem, size = 0x8000, scoped, tag = 'input window, operand 4, single buffered']
    #allocation12 [shape = 'u8[512]{0}', space=vmem, size = 0x400, scoped, tag = 'input window, operand 5, single buffered']
    #allocation13 [shape = 's32[1]{0}', space=sflag, size = 0x4, scoped, tag = 'scoped memory for tpu_custom_call.1']
    #allocation14 [shape = 'u8[512]{0}', space=vmem, size = 0x400, scoped, tag = 'input window, operand 6, single buffered']
    #allocation15 [shape = 'u8[512]{0}', space=vmem, size = 0x400, scoped, tag = 'input window, operand 7, single buffered']
    #allocation16 [shape = 's32[1]{0}', space=sflag, size = 0x4, scoped, tag = 'scoped memory for tpu_custom_call.1']
    #allocation17 [shape = 'u8[32768]{0}', space=vmem, size = 0x8000, scoped, tag = 'input window, operand 8, single buffered']
    #allocation18 [shape = 'u8[512]{0}', space=vmem, size = 0x400, scoped, tag = 'input window, operand 9, single buffered']
    #allocation19 [shape = 's32[1]{0}', space=sflag, size = 0x4, scoped, tag = 'scoped memory for tpu_custom_call.1']
    #allocation20 [shape = 'u8[65536]{0}', space=vmem, size = 0x10000, scoped, tag = 'output window, operand 0, single buffered']
    %15 = vsyncpa [#allocation4], 0
    %16 = vsyncpa [#allocation7], 0
    %17 = vsyncpa [#allocation10], 0
    %18 = vsyncpa [#allocation13], 0
    %19 = vsyncpa [#allocation16], 0
    %20 = vsyncpa [#allocation19], 0
    %21 = vsyncpa [#allocation5], 0
    // Predicated region
    $region2: #{tpu_custom_call.1} parent=1 // pred_check
      _
    $region3: #{tpu_custom_call.1} parent=1 // pred_check_branch
      %23 = sbr.rel (0) target = $region5
    $region4: #{tpu_custom_call.1} parent=1 // pred_region
      %s25 = ssub.s32 2048, 2048
      %26 = vsyncadd [#allocation4], %s25
      %s27 = sshll.u32 [#allocation3], 4
      %s28 = int_to_ptr.vmem [resolvable:$true] %s27
      %33 = dma.hbm_to_vmem [thread:$0]  %s0, 2048, %s28, [#allocation4], 128, 128, 8
    $region5: #{tpu_custom_call.1} parent=1 // pred_fallthru
      _
    // Predicated region
    $region6: #{tpu_custom_call.1} parent=1 // pred_check
      _
    $region7: #{tpu_custom_call.1} parent=1 // pred_check_branch
      %35 = sbr.rel (0) target = $region9
    $region8: #{tpu_custom_call.1} parent=1 // pred_region
      %s37 = ssub.s32 2048, 2048
      %38 = vsyncadd [#allocation7], %s37
      %s39 = sshll.u32 [#allocation6], 4
      %s40 = int_to_ptr.vmem [resolvable:$true] %s39
      %45 = dma.hbm_to_vmem [thread:$0]  %s1, 2048, %s40, [#allocation7], 128, 128, 8
    $region9: #{tpu_custom_call.1} parent=1 // pred_fallthru
      _
    // Predicated region
    $region10: #{tpu_custom_call.1} parent=1 // pred_check
      _
    $region11: #{tpu_custom_call.1} parent=1 // pred_check_branch
      %47 = sbr.rel (0) target = $region13
    $region12: #{tpu_custom_call.1} parent=1 // pred_region
      %s49 = ssub.s32 1024, 1024
      %50 = vsyncadd [#allocation7], %s49
      %s51 = sshll.u32 [#allocation8], 4
      %s52 = int_to_ptr.vmem [resolvable:$true] %s51
      %57 = dma.hbm_to_vmem [thread:$0]  %s2, 1024, %s52, [#allocation7], 64, 64, 4
    $region13: #{tpu_custom_call.1} parent=1 // pred_fallthru
      _
    // Predicated region
    $region14: #{tpu_custom_call.1} parent=1 // pred_check
      _
    $region15: #{tpu_custom_call.1} parent=1 // pred_check_branch
      %59 = sbr.rel (0) target = $region17
    $region16: #{tpu_custom_call.1} parent=1 // pred_region
      %s61 = ssub.s32 1024, 1024
      %62 = vsyncadd [#allocation10], %s61
      %s63 = sshll.u32 [#allocation9], 4
      %s64 = int_to_ptr.vmem [resolvable:$true] %s63
      %69 = dma.hbm_to_vmem [thread:$0]  %s3, 1024, %s64, [#allocation10], 64, 64, 4
    $region17: #{tpu_custom_call.1} parent=1 // pred_fallthru
      _
    // Predicated region
    $region18: #{tpu_custom_call.1} parent=1 // pred_check
      _
    $region19: #{tpu_custom_call.1} parent=1 // pred_check_branch
      %71 = sbr.rel (0) target = $region21
    $region20: #{tpu_custom_call.1} parent=1 // pred_region
      %s73 = ssub.s32 1024, 1024
      %74 = vsyncadd [#allocation10], %s73
      %s75 = sshll.u32 [#allocation11], 4
      %s76 = int_to_ptr.vmem [resolvable:$true] %s75
      %81 = dma.hbm_to_vmem [thread:$0]  %s4, 1024, %s76, [#allocation10], 64, 64, 4
    $region21: #{tpu_custom_call.1} parent=1 // pred_fallthru
      _
    // Predicated region
    $region22: #{tpu_custom_call.1} parent=1 // pred_check
      _
    $region23: #{tpu_custom_call.1} parent=1 // pred_check_branch
      %83 = sbr.rel (0) target = $region25
    $region24: #{tpu_custom_call.1} parent=1 // pred_region
      %s85 = ssub.s32 16, 16
      %86 = vsyncadd [#allocation13], %s85
      %s88 = sshll.u32 [#allocation12], 4
      %s89 = int_to_ptr.vmem [resolvable:$true] %s88
      %91 = dma.hbm_to_vmem [thread:$0]  %s5, 16, %s89, [#allocation13]
    $region25: #{tpu_custom_call.1} parent=1 // pred_fallthru
      _
    // Predicated region
    $region26: #{tpu_custom_call.1} parent=1 // pred_check
      _
    $region27: #{tpu_custom_call.1} parent=1 // pred_check_branch
      %93 = sbr.rel (0) target = $region29
    $region28: #{tpu_custom_call.1} parent=1 // pred_region
      %s95 = ssub.s32 16, 16
      %96 = vsyncadd [#allocation13], %s95
      %s98 = sshll.u32 [#allocation14], 4
      %s99 = int_to_ptr.vmem [resolvable:$true] %s98
      %101 = dma.hbm_to_vmem [thread:$0]  %s6, 16, %s99, [#allocation13]
    $region29: #{tpu_custom_call.1} parent=1 // pred_fallthru
      _
    // Predicated region
    $region30: #{tpu_custom_call.1} parent=1 // pred_check
      _
    $region31: #{tpu_custom_call.1} parent=1 // pred_check_branch
      %103 = sbr.rel (0) target = $region33
    $region32: #{tpu_custom_call.1} parent=1 // pred_region
      %s105 = ssub.s32 16, 16
      %106 = vsyncadd [#allocation16], %s105
      %s108 = sshll.u32 [#allocation15], 4
      %s109 = int_to_ptr.vmem [resolvable:$true] %s108
      %111 = dma.hbm_to_vmem [thread:$0]  %s7, 16, %s109, [#allocation16]
    $region33: #{tpu_custom_call.1} parent=1 // pred_fallthru
      _
    // Predicated region
    $region34: #{tpu_custom_call.1} parent=1 // pred_check
      _
    $region35: #{tpu_custom_call.1} parent=1 // pred_check_branch
      %113 = sbr.rel (0) target = $region37
    $region36: #{tpu_custom_call.1} parent=1 // pred_region
      %s115 = ssub.s32 1024, 1024
      %116 = vsyncadd [#allocation16], %s115
      %s117 = sshll.u32 [#allocation17], 4
      %s118 = int_to_ptr.vmem [resolvable:$true] %s117
      %123 = dma.hbm_to_vmem [thread:$0]  %s8, 1024, %s118, [#allocation16], 64, 64, 4
    $region37: #{tpu_custom_call.1} parent=1 // pred_fallthru
      _
    // Predicated region
    $region38: #{tpu_custom_call.1} parent=1 // pred_check
      _
    $region39: #{tpu_custom_call.1} parent=1 // pred_check_branch
      %125 = sbr.rel (0) target = $region41
    $region40: #{tpu_custom_call.1} parent=1 // pred_region
      %s127 = ssub.s32 16, 16
      %128 = vsyncadd [#allocation19], %s127
      %s130 = sshll.u32 [#allocation18], 4
      %s131 = int_to_ptr.vmem [resolvable:$true] %s130
      %133 = dma.hbm_to_vmem [thread:$0]  %s9, 16, %s131, [#allocation19]
    $region41: #{tpu_custom_call.1} parent=1 // pred_fallthru
      _
    // Predicated region
    $region42: #{tpu_custom_call.1} parent=1 // pred_check
      _
    $region43: #{tpu_custom_call.1} parent=1 // pred_check_branch
      %135 = sbr.rel (0) target = $region45
    $region44: #{tpu_custom_call.1} parent=1 // pred_region
      %136 = dma.done [#allocation4], 2048
    $region45: #{tpu_custom_call.1} parent=1 // pred_fallthru
      _
    // Predicated region
    $region46: #{tpu_custom_call.1} parent=1 // pred_check
      _
    $region47: #{tpu_custom_call.1} parent=1 // pred_check_branch
      %138 = sbr.rel (0) target = $region49
    $region48: #{tpu_custom_call.1} parent=1 // pred_region
      %139 = dma.done [#allocation7], 2048
    $region49: #{tpu_custom_call.1} parent=1 // pred_fallthru
      _
    // Predicated region
    $region50: #{tpu_custom_call.1} parent=1 // pred_check
      _
    $region51: #{tpu_custom_call.1} parent=1 // pred_check_branch
      %141 = sbr.rel (0) target = $region53
    $region52: #{tpu_custom_call.1} parent=1 // pred_region
      %142 = dma.done [#allocation7], 1024
    $region53: #{tpu_custom_call.1} parent=1 // pred_fallthru
      _
    // Predicated region
    $region54: #{tpu_custom_call.1} parent=1 // pred_check
      _
    $region55: #{tpu_custom_call.1} parent=1 // pred_check_branch
      %144 = sbr.rel (0) target = $region57
    $region56: #{tpu_custom_call.1} parent=1 // pred_region
      %145 = dma.done [#allocation10], 1024
    $region57: #{tpu_custom_call.1} parent=1 // pred_fallthru
      _
    // Predicated region
    $region58: #{tpu_custom_call.1} parent=1 // pred_check
      _
    $region59: #{tpu_custom_call.1} parent=1 // pred_check_branch
      %147 = sbr.rel (0) target = $region61
    $region60: #{tpu_custom_call.1} parent=1 // pred_region
      %148 = dma.done [#allocation10], 1024
    $region61: #{tpu_custom_call.1} parent=1 // pred_fallthru
      _
    // Predicated region
    $region62: #{tpu_custom_call.1} parent=1 // pred_check
      _
    $region63: #{tpu_custom_call.1} parent=1 // pred_check_branch
      %150 = sbr.rel (0) target = $region65
    $region64: #{tpu_custom_call.1} parent=1 // pred_region
      %151 = dma.done [#allocation13], 16
    $region65: #{tpu_custom_call.1} parent=1 // pred_fallthru
      _
    // Predicated region
    $region66: #{tpu_custom_call.1} parent=1 // pred_check
      _
    $region67: #{tpu_custom_call.1} parent=1 // pred_check_branch
      %153 = sbr.rel (0) target = $region69
    $region68: #{tpu_custom_call.1} parent=1 // pred_region
      %154 = dma.done [#allocation13], 16
    $region69: #{tpu_custom_call.1} parent=1 // pred_fallthru
      _
    // Predicated region
    $region70: #{tpu_custom_call.1} parent=1 // pred_check
      _
    $region71: #{tpu_custom_call.1} parent=1 // pred_check_branch
      %156 = sbr.rel (0) target = $region73
    $region72: #{tpu_custom_call.1} parent=1 // pred_region
      %157 = dma.done [#allocation16], 16
    $region73: #{tpu_custom_call.1} parent=1 // pred_fallthru
      _
    // Predicated region
    $region74: #{tpu_custom_call.1} parent=1 // pred_check
      _
    $region75: #{tpu_custom_call.1} parent=1 // pred_check_branch
      %159 = sbr.rel (0) target = $region77
    $region76: #{tpu_custom_call.1} parent=1 // pred_region
      %160 = dma.done [#allocation16], 1024
    $region77: #{tpu_custom_call.1} parent=1 // pred_fallthru
      _
    // Predicated region
    $region78: #{tpu_custom_call.1} parent=1 // pred_check
      _
    $region79: #{tpu_custom_call.1} parent=1 // pred_check_branch
      %162 = sbr.rel (0) target = $region81
    $region80: #{tpu_custom_call.1} parent=1 // pred_region
      %163 = dma.done [#allocation19], 16
    $region81: #{tpu_custom_call.1} parent=1 // pred_fallthru
      _
    %v165 = vld [vmem:[#allocation3] sm:$0xff]
    %v166 = vld [vmem:[#allocation3 + $0x8] sm:$0xff]
    %v167 = vld [vmem:[#allocation3 + $0x10] sm:$0xff]
    %v168 = vld [vmem:[#allocation3 + $0x18] sm:$0xff]
    %v169 = vld [vmem:[#allocation3 + $0x20] sm:$0xff]
    %v170 = vld [vmem:[#allocation3 + $0x28] sm:$0xff]
    %v171 = vld [vmem:[#allocation3 + $0x30] sm:$0xff]
    %v172 = vld [vmem:[#allocation3 + $0x38] sm:$0xff]
    %v173 = vld [vmem:[#allocation3 + $0x40] sm:$0xff]
    %v174 = vld [vmem:[#allocation3 + $0x48] sm:$0xff]
    %v175 = vld [vmem:[#allocation3 + $0x50] sm:$0xff]
    %v176 = vld [vmem:[#allocation3 + $0x58] sm:$0xff]
    %v177 = vld [vmem:[#allocation3 + $0x60] sm:$0xff]
    %v178 = vld [vmem:[#allocation3 + $0x68] sm:$0xff]
    %v179 = vld [vmem:[#allocation3 + $0x70] sm:$0xff]
    %v180 = vld [vmem:[#allocation3 + $0x78] sm:$0xff]
    %v181 = vld [vmem:[#allocation6] sm:$0xff]
    %v182 = vld [vmem:[#allocation6 + $0x8] sm:$0xff]
    %v183 = vld [vmem:[#allocation6 + $0x10] sm:$0xff]
    %v184 = vld [vmem:[#allocation6 + $0x18] sm:$0xff]
    %v185 = vld [vmem:[#allocation6 + $0x20] sm:$0xff]
    %v186 = vld [vmem:[#allocation6 + $0x28] sm:$0xff]
    %v187 = vld [vmem:[#allocation6 + $0x30] sm:$0xff]
    %v188 = vld [vmem:[#allocation6 + $0x38] sm:$0xff]
    %v189 = vld [vmem:[#allocation6 + $0x40] sm:$0xff]
    %v190 = vld [vmem:[#allocation6 + $0x48] sm:$0xff]
    %v191 = vld [vmem:[#allocation6 + $0x50] sm:$0xff]
    %v192 = vld [vmem:[#allocation6 + $0x58] sm:$0xff]
    %v193 = vld [vmem:[#allocation6 + $0x60] sm:$0xff]
    %v194 = vld [vmem:[#allocation6 + $0x68] sm:$0xff]
    %v195 = vld [vmem:[#allocation6 + $0x70] sm:$0xff]
    %v196 = vld [vmem:[#allocation6 + $0x78] sm:$0xff]
    %v197 = vadd.f32 %v165, %v166
    %v198 = vadd.f32 %v197, %v167
    %v199 = vadd.f32 %v198, %v168
    %v200 = vadd.f32 %v199, %v169
    %v201 = vadd.f32 %v200, %v170
    %v202 = vadd.f32 %v201, %v171
    %v203 = vadd.f32 %v202, %v172
    %v204 = vrot.slane %v203, 4
    %v205 = vadd.f32 %v203, %v204
    %v206 = vrot.slane %v205, 2
    %v207 = vadd.f32 %v205, %v206
    %v208 = vrot.slane %v207, 1
    %v209 = vadd.f32 %v207, %v208
    %v210 = vadd.f32 %v173, %v174
    %v211 = vadd.f32 %v210, %v175
    %v212 = vadd.f32 %v211, %v176
    %v213 = vadd.f32 %v212, %v177
    %v214 = vadd.f32 %v213, %v178
    %v215 = vadd.f32 %v214, %v179
    %v216 = vadd.f32 %v215, %v180
    %v217 = vrot.slane %v216, 4
    %v218 = vadd.f32 %v216, %v217
    %v219 = vrot.slane %v218, 2
    %v220 = vadd.f32 %v218, %v219
    %v221 = vrot.slane %v220, 1
    %v222 = vadd.f32 %v220, %v221
    %v223 = vmul.f32 %v165, %v165
    %v224 = vmul.f32 %v166, %v166
    %v225 = vmul.f32 %v167, %v167
    %v226 = vmul.f32 %v168, %v168
    %v227 = vmul.f32 %v169, %v169
    %v228 = vmul.f32 %v170, %v170
    %v229 = vmul.f32 %v171, %v171
    %v230 = vmul.f32 %v172, %v172
    %v231 = vmul.f32 %v173, %v173
    %v232 = vmul.f32 %v174, %v174
    %v233 = vmul.f32 %v175, %v175
    %v234 = vmul.f32 %v176, %v176
    %v235 = vmul.f32 %v177, %v177
    %v236 = vmul.f32 %v178, %v178
    %v237 = vmul.f32 %v179, %v179
    %v238 = vmul.f32 %v180, %v180
    %v239 = vadd.f32 %v223, %v224
    %v240 = vadd.f32 %v239, %v225
    %v241 = vadd.f32 %v240, %v226
    %v242 = vadd.f32 %v241, %v227
    %v243 = vadd.f32 %v242, %v228
    %v244 = vadd.f32 %v243, %v229
    %v245 = vadd.f32 %v244, %v230
    %v246 = vrot.slane %v245, 4
    %v247 = vadd.f32 %v245, %v246
    %v248 = vrot.slane %v247, 2
    %v249 = vadd.f32 %v247, %v248
    %v250 = vrot.slane %v249, 1
    %v251 = vadd.f32 %v249, %v250
    %v252 = vadd.f32 %v231, %v232
    %v253 = vadd.f32 %v252, %v233
    %v254 = vadd.f32 %v253, %v234
    %v255 = vadd.f32 %v254, %v235
    %v256 = vadd.f32 %v255, %v236
    %v257 = vadd.f32 %v256, %v237
    %v258 = vadd.f32 %v257, %v238
    %v259 = vrot.slane %v258, 4
    %v260 = vadd.f32 %v258, %v259
    %v261 = vrot.slane %v260, 2
    %v262 = vadd.f32 %v260, %v261
    %v263 = vrot.slane %v262, 1
    %v264 = vadd.f32 %v262, %v263
    %vm267 = vcmask 1041409
    %v268 = vsel %vm267, %v222, %v209
    %270 = vmatprep.subr.mxu0 0.0
    %271 = vmatpush1.msra.mxu0 %v181
    %272 = vmatprep.subr.mxu0 0.0
    %273 = vmatpush1.msra.mxu0 %v182
    %274 = vmatprep.subr.mxu0 0.0
    %275 = vmatpush1.msra.mxu0 %v183
    %276 = vmatprep.subr.mxu0 0.0
    %277 = vmatpush1.msra.mxu0 %v184
    %278 = vmatprep.subr.mxu0 0.0
    %279 = vmatpush1.msra.mxu0 %v185
    %280 = vmatprep.subr.mxu0 0.0
    %281 = vmatpush1.msra.mxu0 %v186
    %282 = vmatprep.subr.mxu0 0.0
    %283 = vmatpush1.msra.mxu0 %v187
    %284 = vmatprep.subr.mxu0 0.0
    %285 = vmatpush1.msra.mxu0 %v188
    %286 = vmatprep.subr.mxu0 0.0
    %287 = vmatpush1.msra.mxu0 %v189
    %288 = vmatprep.subr.mxu0 0.0
    %289 = vmatpush1.msra.mxu0 %v190
    %290 = vmatprep.subr.mxu0 0.0
    %291 = vmatpush1.msra.mxu0 %v191
    %292 = vmatprep.subr.mxu0 0.0
    %293 = vmatpush1.msra.mxu0 %v192
    %294 = vmatprep.subr.mxu0 0.0
    %295 = vmatpush1.msra.mxu0 %v193
    %296 = vmatprep.subr.mxu0 0.0
    %297 = vmatpush1.msra.mxu0 %v194
    %298 = vmatprep.subr.mxu0 0.0
    %299 = vmatpush1.msra.mxu0 %v195
    %300 = vmatprep.subr.mxu0 0.0
    %301 = vmatpush1.msra.mxu0 %v196
    %302 = vmatprep.subr.mxu0 0.0
    %303 = vmatpush1.msra.mxu0 0.0
    %304 = vmatprep.subr.mxu0 0.0
    %305 = vmatpush1.msra.mxu0 0.0
    %306 = vmatprep.subr.mxu0 0.0
    %307 = vmatpush1.msra.mxu0 0.0
    %308 = vmatprep.subr.mxu0 0.0
    %309 = vmatpush1.msra.mxu0 0.0
    %310 = vmatprep.subr.mxu0 0.0
    %311 = vmatpush1.msra.mxu0 0.0
    %312 = vmatprep.subr.mxu0 0.0
    %313 = vmatpush1.msra.mxu0 0.0
    %314 = vmatprep.subr.mxu0 0.0
    %315 = vmatpush1.msra.mxu0 0.0
    %316 = vmatprep.subr.mxu0 0.0
    %317 = vmatpush1.msra.mxu0 0.0
    %318 = vmatprep.subr.mxu0 0.0
    %319 = vmatpush1.msra.mxu0 0.0
    %320 = vmatprep.subr.mxu0 0.0
    %321 = vmatpush1.msra.mxu0 0.0
    %322 = vmatprep.subr.mxu0 0.0
    %323 = vmatpush1.msra.mxu0 0.0
    %324 = vmatprep.subr.mxu0 0.0
    %325 = vmatpush1.msra.mxu0 0.0
    %326 = vmatprep.subr.mxu0 0.0
    %327 = vmatpush1.msra.mxu0 0.0
    %328 = vmatprep.subr.mxu0 0.0
    %329 = vmatpush1.msra.mxu0 0.0
    %330 = vmatprep.subr.mxu0 0.0
    %331 = vmatpush1.msra.mxu0 0.0
    %332 = vmatprep.subr.mxu0 0.0
    %333 = vmatpush1.msra.mxu0 0.0
    %334 = vmatprep.mubr.f32.mxu0 0.0
    %335 = vmatmul.mubr.f32.gmra.mrb[0].mxu0 %v268
    %v336 = vpop.f32.mrb[0].mxu0
    %v337 = vadd.f32 0.0, %v336
    %v338 = vpop.f32.mrb[0].mxu0
    %339 = vdwg.mxu0
    %v340 = vmul.f32 %v337, 0.00390625
    %v343 = vsel %vm267, %v264, %v251
    %345 = vmatprep.subr.mxu0 0.0
    %346 = vmatpush1.msra.mxu0 %v181
    %347 = vmatprep.subr.mxu0 0.0
    %348 = vmatpush1.msra.mxu0 %v182
    %349 = vmatprep.subr.mxu0 0.0
    %350 = vmatpush1.msra.mxu0 %v183
    %351 = vmatprep.subr.mxu0 0.0
    %352 = vmatpush1.msra.mxu0 %v184
    %353 = vmatprep.subr.mxu0 0.0
    %354 = vmatpush1.msra.mxu0 %v185
    %355 = vmatprep.subr.mxu0 0.0
    %356 = vmatpush1.msra.mxu0 %v186
    %357 = vmatprep.subr.mxu0 0.0
    %358 = vmatpush1.msra.mxu0 %v187
    %359 = vmatprep.subr.mxu0 0.0
    %360 = vmatpush1.msra.mxu0 %v188
    %361 = vmatprep.subr.mxu0 0.0
    %362 = vmatpush1.msra.mxu0 %v189
    %363 = vmatprep.subr.mxu0 0.0
    %364 = vmatpush1.msra.mxu0 %v190
    %365 = vmatprep.subr.mxu0 0.0
    %366 = vmatpush1.msra.mxu0 %v191
    %367 = vmatprep.subr.mxu0 0.0
    %368 = vmatpush1.msra.mxu0 %v192
    %369 = vmatprep.subr.mxu0 0.0
    %370 = vmatpush1.msra.mxu0 %v193
    %371 = vmatprep.subr.mxu0 0.0
    %372 = vmatpush1.msra.mxu0 %v194
    %373 = vmatprep.subr.mxu0 0.0
    %374 = vmatpush1.msra.mxu0 %v195
    %375 = vmatprep.subr.mxu0 0.0
    %376 = vmatpush1.msra.mxu0 %v196
    %377 = vmatprep.subr.mxu0 0.0
    %378 = vmatpush1.msra.mxu0 0.0
    %379 = vmatprep.subr.mxu0 0.0
    %380 = vmatpush1.msra.mxu0 0.0
    %381 = vmatprep.subr.mxu0 0.0
    %382 = vmatpush1.msra.mxu0 0.0
    %383 = vmatprep.subr.mxu0 0.0
    %384 = vmatpush1.msra.mxu0 0.0
    %385 = vmatprep.subr.mxu0 0.0
    %386 = vmatpush1.msra.mxu0 0.0
    %387 = vmatprep.subr.mxu0 0.0
    %388 = vmatpush1.msra.mxu0 0.0
    %389 = vmatprep.subr.mxu0 0.0
    %390 = vmatpush1.msra.mxu0 0.0
    %391 = vmatprep.subr.mxu0 0.0
    %392 = vmatpush1.msra.mxu0 0.0
    %393 = vmatprep.subr.mxu0 0.0
    %394 = vmatpush1.msra.mxu0 0.0
    %395 = vmatprep.subr.mxu0 0.0
    %396 = vmatpush1.msra.mxu0 0.0
    %397 = vmatprep.subr.mxu0 0.0
    %398 = vmatpush1.msra.mxu0 0.0
    %399 = vmatprep.subr.mxu0 0.0
    %400 = vmatpush1.msra.mxu0 0.0
    %401 = vmatprep.subr.mxu0 0.0
    %402 = vmatpush1.msra.mxu0 0.0
    %403 = vmatprep.subr.mxu0 0.0
    %404 = vmatpush1.msra.mxu0 0.0
    %405 = vmatprep.subr.mxu0 0.0
    %406 = vmatpush1.msra.mxu0 0.0
    %407 = vmatprep.subr.mxu0 0.0
    %408 = vmatpush1.msra.mxu0 0.0
    %409 = vmatprep.mubr.f32.mxu0 0.0
    %410 = vmatmul.mubr.f32.gmra.mrb[0].mxu0 %v343
    %v411 = vpop.f32.mrb[0].mxu0
    %v412 = vadd.f32 0.0, %v411
    %v413 = vpop.f32.mrb[0].mxu0
    %414 = vdwg.mxu0
    %v415 = vmul.f32 %v412, 0.00390625
    %v416 = vmul.f32 %v340, %v340
    %v417 = vsub.f32 %v415, %v416
    %v418 = vadd.f32 %v417, 1e-05
    %v419 = vrsqrt.pop %v418
    %vm420 = vcmask 261120
    %v422 = vsel %vm420, %v340, 0
    %v425 = vsel %vm420, %v181, 0
    %v428 = vsel %vm420, %v182, 0
    %v431 = vsel %vm420, %v183, 0
    %v434 = vsel %vm420, %v184, 0
    %v437 = vsel %vm420, %v185, 0
    %v440 = vsel %vm420, %v186, 0
    %v443 = vsel %vm420, %v187, 0
    %v446 = vsel %vm420, %v188, 0
    %v449 = vsel %vm420, %v189, 0
    %v452 = vsel %vm420, %v190, 0
    %v455 = vsel %vm420, %v191, 0
    %v458 = vsel %vm420, %v192, 0
    %v461 = vsel %vm420, %v193, 0
    %v464 = vsel %vm420, %v194, 0
    %v467 = vsel %vm420, %v195, 0
    %v470 = vsel %vm420, %v196, 0
    %472 = vmatprep.subr.mxu0 0.0
    %473 = vmatpush1.xpose.msra.mxu0 %v425
    %474 = vmatprep.subr.mxu0 0.0
    %475 = vmatpush1.xpose.msra.mxu0 %v428
    %476 = vmatprep.subr.mxu0 0.0
    %477 = vmatpush1.xpose.msra.mxu0 %v431
    %478 = vmatprep.subr.mxu0 0.0
    %479 = vmatpush1.xpose.msra.mxu0 %v434
    %480 = vmatprep.subr.mxu0 0.0
    %481 = vmatpush1.xpose.msra.mxu0 %v437
    %482 = vmatprep.subr.mxu0 0.0
    %483 = vmatpush1.xpose.msra.mxu0 %v440
    %484 = vmatprep.subr.mxu0 0.0
    %485 = vmatpush1.xpose.msra.mxu0 %v443
    %486 = vmatprep.subr.mxu0 0.0
    %487 = vmatpush1.xpose.msra.mxu0 %v446
    %488 = vmatprep.subr.mxu0 0.0
    %489 = vmatpush1.xpose.msra.mxu0 %v449
    %490 = vmatprep.subr.mxu0 0.0
    %491 = vmatpush1.xpose.msra.mxu0 %v452
    %492 = vmatprep.subr.mxu0 0.0
    %493 = vmatpush1.xpose.msra.mxu0 %v455
    %494 = vmatprep.subr.mxu0 0.0
    %495 = vmatpush1.xpose.msra.mxu0 %v458
    %496 = vmatprep.subr.mxu0 0.0
    %497 = vmatpush1.xpose.msra.mxu0 %v461
    %498 = vmatprep.subr.mxu0 0.0
    %499 = vmatpush1.xpose.msra.mxu0 %v464
    %500 = vmatprep.subr.mxu0 0.0
    %501 = vmatpush1.xpose.msra.mxu0 %v467
    %502 = vmatprep.subr.mxu0 0.0
    %503 = vmatpush1.xpose.msra.mxu0 %v470
    %504 = vmatprep.subr.mxu0 0.0
    %505 = vmatpush1.xpose.msra.mxu0 0.0
    %506 = vmatprep.subr.mxu0 0.0
    %507 = vmatpush1.xpose.msra.mxu0 0.0
    %508 = vmatprep.subr.mxu0 0.0
    %509 = vmatpush1.xpose.msra.mxu0 0.0
    %510 = vmatprep.subr.mxu0 0.0
    %511 = vmatpush1.xpose.msra.mxu0 0.0
    %512 = vmatprep.subr.mxu0 0.0
    %513 = vmatpush1.xpose.msra.mxu0 0.0
    %514 = vmatprep.subr.mxu0 0.0
    %515 = vmatpush1.xpose.msra.mxu0 0.0
    %516 = vmatprep.subr.mxu0 0.0
    %517 = vmatpush1.xpose.msra.mxu0 0.0
    %518 = vmatprep.subr.mxu0 0.0
    %519 = vmatpush1.xpose.msra.mxu0 0.0
    %520 = vmatprep.subr.mxu0 0.0
    %521 = vmatpush1.xpose.msra.mxu0 0.0
    %522 = vmatprep.subr.mxu0 0.0
    %523 = vmatpush1.xpose.msra.mxu0 0.0
    %524 = vmatprep.subr.mxu0 0.0
    %525 = vmatpush1.xpose.msra.mxu0 0.0
    %526 = vmatprep.subr.mxu0 0.0
    %527 = vmatpush1.xpose.msra.mxu0 0.0
    %528 = vmatprep.subr.mxu0 0.0
    %529 = vmatpush1.xpose.msra.mxu0 0.0
    %530 = vmatprep.subr.mxu0 0.0
    %531 = vmatpush1.xpose.msra.mxu0 0.0
    %532 = vmatprep.subr.mxu0 0.0
    %533 = vmatpush1.xpose.msra.mxu0 0.0
    %534 = vmatprep.subr.mxu0 0.0
    %535 = vmatpush1.xpose.msra.mxu0 0.0
    %536 = vmatprep.mubr.f32.mxu0 0.0
    %537 = vmatmul.mubr.f32.gmra.mrb[0].mxu0 %v422
    %v538 = vpop.f32.mrb[0].mxu0
    %v539 = vadd.f32 0.0, %v538
    %v540 = vpop.f32.mrb[0].mxu0
    %541 = vdwg.mxu0
    %v543 = vsel %vm420, %v419, 0
    %545 = vmatprep.subr.mxu0 0.0
    %546 = vmatpush1.xpose.msra.mxu0 %v425
    %547 = vmatprep.subr.mxu0 0.0
    %548 = vmatpush1.xpose.msra.mxu0 %v428
    %549 = vmatprep.subr.mxu0 0.0
    %550 = vmatpush1.xpose.msra.mxu0 %v431
    %551 = vmatprep.subr.mxu0 0.0
    %552 = vmatpush1.xpose.msra.mxu0 %v434
    %553 = vmatprep.subr.mxu0 0.0
    %554 = vmatpush1.xpose.msra.mxu0 %v437
    %555 = vmatprep.subr.mxu0 0.0
    %556 = vmatpush1.xpose.msra.mxu0 %v440
    %557 = vmatprep.subr.mxu0 0.0
    %558 = vmatpush1.xpose.msra.mxu0 %v443
    %559 = vmatprep.subr.mxu0 0.0
    %560 = vmatpush1.xpose.msra.mxu0 %v446
    %561 = vmatprep.subr.mxu0 0.0
    %562 = vmatpush1.xpose.msra.mxu0 %v449
    %563 = vmatprep.subr.mxu0 0.0
    %564 = vmatpush1.xpose.msra.mxu0 %v452
    %565 = vmatprep.subr.mxu0 0.0
    %566 = vmatpush1.xpose.msra.mxu0 %v455
    %567 = vmatprep.subr.mxu0 0.0
    %568 = vmatpush1.xpose.msra.mxu0 %v458
    %569 = vmatprep.subr.mxu0 0.0
    %570 = vmatpush1.xpose.msra.mxu0 %v461
    %571 = vmatprep.subr.mxu0 0.0
    %572 = vmatpush1.xpose.msra.mxu0 %v464
    %573 = vmatprep.subr.mxu0 0.0
    %574 = vmatpush1.xpose.msra.mxu0 %v467
    %575 = vmatprep.subr.mxu0 0.0
    %576 = vmatpush1.xpose.msra.mxu0 %v470
    %577 = vmatprep.subr.mxu0 0.0
    %578 = vmatpush1.xpose.msra.mxu0 0.0
    %579 = vmatprep.subr.mxu0 0.0
    %580 = vmatpush1.xpose.msra.mxu0 0.0
    %581 = vmatprep.subr.mxu0 0.0
    %582 = vmatpush1.xpose.msra.mxu0 0.0
    %583 = vmatprep.subr.mxu0 0.0
    %584 = vmatpush1.xpose.msra.mxu0 0.0
    %585 = vmatprep.subr.mxu0 0.0
    %586 = vmatpush1.xpose.msra.mxu0 0.0
    %587 = vmatprep.subr.mxu0 0.0
    %588 = vmatpush1.xpose.msra.mxu0 0.0
    %589 = vmatprep.subr.mxu0 0.0
    %590 = vmatpush1.xpose.msra.mxu0 0.0
    %591 = vmatprep.subr.mxu0 0.0
    %592 = vmatpush1.xpose.msra.mxu0 0.0
    %593 = vmatprep.subr.mxu0 0.0
    %594 = vmatpush1.xpose.msra.mxu0 0.0
    %595 = vmatprep.subr.mxu0 0.0
    %596 = vmatpush1.xpose.msra.mxu0 0.0
    %597 = vmatprep.subr.mxu0 0.0
    %598 = vmatpush1.xpose.msra.mxu0 0.0
    %599 = vmatprep.subr.mxu0 0.0
    %600 = vmatpush1.xpose.msra.mxu0 0.0
    %601 = vmatprep.subr.mxu0 0.0
    %602 = vmatpush1.xpose.msra.mxu0 0.0
    %603 = vmatprep.subr.mxu0 0.0
    %604 = vmatpush1.xpose.msra.mxu0 0.0
    %605 = vmatprep.subr.mxu0 0.0
    %606 = vmatpush1.xpose.msra.mxu0 0.0
    %607 = vmatprep.subr.mxu0 0.0
    %608 = vmatpush1.xpose.msra.mxu0 0.0
    %609 = vmatprep.mubr.f32.mxu0 0.0
    %610 = vmatmul.mubr.f32.gmra.mrb[0].mxu0 %v543
    %v611 = vpop.f32.mrb[0].mxu0
    %v612 = vadd.f32 0.0, %v611
    %v613 = vpop.f32.mrb[0].mxu0
    %614 = vdwg.mxu0
    %v617 = vunpack.c.l.s4 1966171168
    %v618 = vunpack.c.0.s8 %v617
    %v619 = vlaneseq
    %v620 = vshrl.u32 %v619, 7
    %v621 = vsub.s32 %v618, %v620
    %v622 = vrot.slane %v539, %v621
    %v623 = vcombine.high %v622, %v622
    %v625 = vunpack.c.l.s4 1966171168
    %v626 = vunpack.c.0.s8 %v625
    %v627 = vlaneseq
    %v628 = vshrl.u32 %v627, 7
    %v629 = vsub.s32 %v626, %v628
    %v630 = vrot.slane %v622, %v629
    %v632 = vunpack.c.l.s4 1966171168
    %v633 = vunpack.c.0.s8 %v632
    %v634 = vlaneseq
    %v635 = vshrl.u32 %v634, 7
    %v636 = vsub.s32 %v633, %v635
    %v637 = vrot.slane %v623, %v636
    %v638 = vlaneseq
    %v639 = vshrl.u32 %v638, 7
    %v640 = vsub.s32 0, %v639
    %v641 = vrot.slane %v630, %v640
    %v642 = vlaneseq
    %v643 = vshrl.u32 %v642, 7
    %v644 = vsub.s32 0, %v643
    %v645 = vrot.slane %v637, %v644
    %v648 = vsub.f32 %v165, %v641
    %v649 = vsub.f32 %v166, %v641
    %v650 = vsub.f32 %v167, %v641
    %v651 = vsub.f32 %v168, %v641
    %v652 = vsub.f32 %v169, %v641
    %v653 = vsub.f32 %v170, %v641
    %v654 = vsub.f32 %v171, %v641
    %v655 = vsub.f32 %v172, %v641
    %v656 = vsub.f32 %v173, %v645
    %v657 = vsub.f32 %v174, %v645
    %v658 = vsub.f32 %v175, %v645
    %v659 = vsub.f32 %v176, %v645
    %v660 = vsub.f32 %v177, %v645
    %v661 = vsub.f32 %v178, %v645
    %v662 = vsub.f32 %v179, %v645
    %v663 = vsub.f32 %v180, %v645
    %v666 = vunpack.c.l.s4 1966171168
    %v667 = vunpack.c.0.s8 %v666
    %v668 = vlaneseq
    %v669 = vshrl.u32 %v668, 7
    %v670 = vsub.s32 %v667, %v669
    %v671 = vrot.slane %v612, %v670
    %v672 = vcombine.high %v671, %v671
    %v674 = vunpack.c.l.s4 1966171168
    %v675 = vunpack.c.0.s8 %v674
    %v676 = vlaneseq
    %v677 = vshrl.u32 %v676, 7
    %v678 = vsub.s32 %v675, %v677
    %v679 = vrot.slane %v671, %v678
    %v681 = vunpack.c.l.s4 1966171168
    %v682 = vunpack.c.0.s8 %v681
    %v683 = vlaneseq
    %v684 = vshrl.u32 %v683, 7
    %v685 = vsub.s32 %v682, %v684
    %v686 = vrot.slane %v672, %v685
    %v687 = vlaneseq
    %v688 = vshrl.u32 %v687, 7
    %v689 = vsub.s32 0, %v688
    %v690 = vrot.slane %v679, %v689
    %v691 = vlaneseq
    %v692 = vshrl.u32 %v691, 7
    %v693 = vsub.s32 0, %v692
    %v694 = vrot.slane %v686, %v693
    %v697 = vmul.f32 %v648, %v690
    %v698 = vmul.f32 %v649, %v690
    %v699 = vmul.f32 %v650, %v690
    %v700 = vmul.f32 %v651, %v690
    %v701 = vmul.f32 %v652, %v690
    %v702 = vmul.f32 %v653, %v690
    %v703 = vmul.f32 %v654, %v690
    %v704 = vmul.f32 %v655, %v690
    %v705 = vmul.f32 %v656, %v694
    %v706 = vmul.f32 %v657, %v694
    %v707 = vmul.f32 %v658, %v694
    %v708 = vmul.f32 %v659, %v694
    %v709 = vmul.f32 %v660, %v694
    %v710 = vmul.f32 %v661, %v694
    %v711 = vmul.f32 %v662, %v694
    %v712 = vmul.f32 %v663, %v694
    %v713 = vpack.c.bf16 %v698, %v697
    %v714 = vpack.c.bf16 %v700, %v699
    %v715 = vpack.c.bf16 %v702, %v701
    %v716 = vpack.c.bf16 %v704, %v703
    %v717 = vpack.c.bf16 %v706, %v705
    %v718 = vpack.c.bf16 %v708, %v707
    %v719 = vpack.c.bf16 %v710, %v709
    %v720 = vpack.c.bf16 %v712, %v711
    %v721 = vld [vmem:[#allocation8] sm:$0xf]
    %v722 = vld [vmem:[#allocation8 + $0x4] sm:$0xf]
    %v723 = vld [vmem:[#allocation8 + $0x8] sm:$0xf]
    %v724 = vld [vmem:[#allocation8 + $0xc] sm:$0xf]
    %v725 = vld [vmem:[#allocation8 + $0x10] sm:$0xf]
    %v726 = vld [vmem:[#allocation8 + $0x14] sm:$0xf]
    %v727 = vld [vmem:[#allocation8 + $0x18] sm:$0xf]
    %v728 = vld [vmem:[#allocation8 + $0x1c] sm:$0xf]
    %v729 = vld [vmem:[#allocation8 + $0x20] sm:$0xf]
    %v730 = vld [vmem:[#allocation8 + $0x24] sm:$0xf]
    %v731 = vld [vmem:[#allocation8 + $0x28] sm:$0xf]
    %v732 = vld [vmem:[#allocation8 + $0x2c] sm:$0xf]
    %v733 = vld [vmem:[#allocation8 + $0x30] sm:$0xf]
    %v734 = vld [vmem:[#allocation8 + $0x34] sm:$0xf]
    %v735 = vld [vmem:[#allocation8 + $0x38] sm:$0xf]
    %v736 = vld [vmem:[#allocation8 + $0x3c] sm:$0xf]
    %v737 = vld [vmem:[#allocation12] sm:$0x1]
    %v739 = vlaneseq
    %v740 = vshrl.u32 %v739, 7
    %v741 = vsub.s32 0, %v740
    %v742 = vrot.slane %v737, %v741
    %v760 = vunpack.c.l.b16 %v721
    %v761 = vunpack.c.l.b16 %v722
    %v762 = vunpack.c.l.b16 %v723
    %v763 = vunpack.c.l.b16 %v724
    %v764 = vunpack.c.l.b16 %v725
    %v765 = vunpack.c.l.b16 %v726
    %v766 = vunpack.c.l.b16 %v727
    %v767 = vunpack.c.l.b16 %v728
    %v768 = vunpack.c.l.b16 %v729
    %v769 = vunpack.c.l.b16 %v730
    %v770 = vunpack.c.l.b16 %v731
    %v771 = vunpack.c.l.b16 %v732
    %v772 = vunpack.c.l.b16 %v733
    %v773 = vunpack.c.l.b16 %v734
    %v774 = vunpack.c.l.b16 %v735
    %v775 = vunpack.c.l.b16 %v736
    %v776 = vpack.c.b16 %v761, %v760
    %v777 = vpack.c.b16 %v763, %v762
    %v778 = vpack.c.b16 %v765, %v764
    %v779 = vpack.c.b16 %v767, %v766
    %v780 = vpack.c.b16 %v769, %v768
    %v781 = vpack.c.b16 %v771, %v770
    %v782 = vpack.c.b16 %v773, %v772
    %v783 = vpack.c.b16 %v775, %v774
    %792 = vmatprep.subr.bf16.mxu0 0
    %793 = vmatpush1.bf16.msra.mxu0 %v776
    %794 = vmatprep.subr.bf16.mxu0 0
    %795 = vmatpush1.bf16.msra.mxu0 %v777
    %796 = vmatprep.subr.bf16.mxu0 0
    %797 = vmatpush1.bf16.msra.mxu0 %v778
    %798 = vmatprep.subr.bf16.mxu0 0
    %799 = vmatpush1.bf16.msra.mxu0 %v779
    %800 = vmatprep.subr.bf16.mxu0 0
    %801 = vmatpush1.bf16.msra.mxu0 %v780
    %802 = vmatprep.subr.bf16.mxu0 0
    %803 = vmatpush1.bf16.msra.mxu0 %v781
    %804 = vmatprep.subr.bf16.mxu0 0
    %805 = vmatpush1.bf16.msra.mxu0 %v782
    %806 = vmatprep.subr.bf16.mxu0 0
    %807 = vmatpush1.bf16.msra.mxu0 %v783
    %808 = vmatprep.subr.bf16.mxu0 0
    %809 = vmatpush1.bf16.msra.mxu0 0
    %810 = vmatprep.subr.bf16.mxu0 0
    %811 = vmatpush1.bf16.msra.mxu0 0
    %812 = vmatprep.subr.bf16.mxu0 0
    %813 = vmatpush1.bf16.msra.mxu0 0
    %814 = vmatprep.subr.bf16.mxu0 0
    %815 = vmatpush1.bf16.msra.mxu0 0
    %816 = vmatprep.subr.bf16.mxu0 0
    %817 = vmatpush1.bf16.msra.mxu0 0
    %818 = vmatprep.subr.bf16.mxu0 0
    %819 = vmatpush1.bf16.msra.mxu0 0
    %820 = vmatprep.subr.bf16.mxu0 0
    %821 = vmatpush1.bf16.msra.mxu0 0
    %822 = vmatprep.subr.bf16.mxu0 0
    %823 = vmatpush1.bf16.msra.mxu0 0
    %824 = vmatprep.mubr.bf16.mxu0 0
    %825 = vmatmul.mubr.bf16.gmra.mrb[0].mxu0 %v713
    %v826 = vpop.f32.mrb[0].mxu0
    %v827 = vadd.f32 %v742, %v826
    %v828 = vpop.f32.mrb[0].mxu0
    %v829 = vpop.f32.mrb[0].mxu0
    %v830 = vadd.f32 %v742, %v829
    %v831 = vpop.f32.mrb[0].mxu0
    %832 = vmatprep.mubr.bf16.mxu0 0
    %833 = vmatmul.mubr.bf16.gmra.mrb[0].mxu0 %v714
    %v834 = vpop.f32.mrb[0].mxu0
    %v835 = vadd.f32 %v742, %v834
    %v836 = vpop.f32.mrb[0].mxu0
    %v837 = vpop.f32.mrb[0].mxu0
    %v838 = vadd.f32 %v742, %v837
    %v839 = vpop.f32.mrb[0].mxu0
    %840 = vmatprep.mubr.bf16.mxu0 0
    %841 = vmatmul.mubr.bf16.gmra.mrb[0].mxu0 %v715
    %v842 = vpop.f32.mrb[0].mxu0
    %v843 = vadd.f32 %v742, %v842
    %v844 = vpop.f32.mrb[0].mxu0
    %v845 = vpop.f32.mrb[0].mxu0
    %v846 = vadd.f32 %v742, %v845
    %v847 = vpop.f32.mrb[0].mxu0
    %848 = vmatprep.mubr.bf16.mxu0 0
    %849 = vmatmul.mubr.bf16.gmra.mrb[0].mxu0 %v716
    %v850 = vpop.f32.mrb[0].mxu0
    %v851 = vadd.f32 %v742, %v850
    %v852 = vpop.f32.mrb[0].mxu0
    %v853 = vpop.f32.mrb[0].mxu0
    %v854 = vadd.f32 %v742, %v853
    %v855 = vpop.f32.mrb[0].mxu0
    %856 = vmatprep.mubr.bf16.mxu0 0
    %857 = vmatmul.mubr.bf16.gmra.mrb[0].mxu0 %v717
    %v858 = vpop.f32.mrb[0].mxu0
    %v859 = vadd.f32 %v742, %v858
    %v860 = vpop.f32.mrb[0].mxu0
    %v861 = vpop.f32.mrb[0].mxu0
    %v862 = vadd.f32 %v742, %v861
    %v863 = vpop.f32.mrb[0].mxu0
    %864 = vmatprep.mubr.bf16.mxu0 0
    %865 = vmatmul.mubr.bf16.gmra.mrb[0].mxu0 %v718
    %v866 = vpop.f32.mrb[0].mxu0
    %v867 = vadd.f32 %v742, %v866
    %v868 = vpop.f32.mrb[0].mxu0
    %v869 = vpop.f32.mrb[0].mxu0
    %v870 = vadd.f32 %v742, %v869
    %v871 = vpop.f32.mrb[0].mxu0
    %872 = vmatprep.mubr.bf16.mxu0 0
    %873 = vmatmul.mubr.bf16.gmra.mrb[0].mxu0 %v719
    %v874 = vpop.f32.mrb[0].mxu0
    %v875 = vadd.f32 %v742, %v874
    %v876 = vpop.f32.mrb[0].mxu0
    %v877 = vpop.f32.mrb[0].mxu0
    %v878 = vadd.f32 %v742, %v877
    %v879 = vpop.f32.mrb[0].mxu0
    %880 = vmatprep.mubr.bf16.mxu0 0
    %881 = vmatmul.mubr.bf16.gmra.mrb[0].mxu0 %v720
    %v882 = vpop.f32.mrb[0].mxu0
    %v883 = vadd.f32 %v742, %v882
    %v884 = vpop.f32.mrb[0].mxu0
    %v885 = vpop.f32.mrb[0].mxu0
    %v886 = vadd.f32 %v742, %v885
    %v887 = vpop.f32.mrb[0].mxu0
    %888 = vdwg.mxu0
    %v889 = vpack.c.bf16 %v830, %v827
    %v890 = vpack.c.bf16 %v838, %v835
    %v891 = vpack.c.bf16 %v846, %v843
    %v892 = vpack.c.bf16 %v854, %v851
    %v893 = vpack.c.bf16 %v862, %v859
    %v894 = vpack.c.bf16 %v870, %v867
    %v895 = vpack.c.bf16 %v878, %v875
    %v896 = vpack.c.bf16 %v886, %v883
    %897 = vst [vmem:[#allocation2] sm:$0xff] %v889
    %898 = vst [vmem:[#allocation2 + $0x8] sm:$0xff] %v890
    %899 = vst [vmem:[#allocation2 + $0x10] sm:$0xff] %v891
    %900 = vst [vmem:[#allocation2 + $0x18] sm:$0xff] %v892
    %901 = vst [vmem:[#allocation2 + $0x20] sm:$0xff] %v893
    %902 = vst [vmem:[#allocation2 + $0x28] sm:$0xff] %v894
    %903 = vst [vmem:[#allocation2 + $0x30] sm:$0xff] %v895
    %904 = vst [vmem:[#allocation2 + $0x38] sm:$0xff] %v896
    %v905 = vld [vmem:[#allocation9] sm:$0xf]
    %v906 = vld [vmem:[#allocation9 + $0x4] sm:$0xf]
    %v907 = vld [vmem:[#allocation9 + $0x8] sm:$0xf]
    %v908 = vld [vmem:[#allocation9 + $0xc] sm:$0xf]
    %v909 = vld [vmem:[#allocation9 + $0x10] sm:$0xf]
    %v910 = vld [vmem:[#allocation9 + $0x14] sm:$0xf]
    %v911 = vld [vmem:[#allocation9 + $0x18] sm:$0xf]
    %v912 = vld [vmem:[#allocation9 + $0x1c] sm:$0xf]
    %v913 = vld [vmem:[#allocation9 + $0x20] sm:$0xf]
    %v914 = vld [vmem:[#allocation9 + $0x24] sm:$0xf]
    %v915 = vld [vmem:[#allocation9 + $0x28] sm:$0xf]
    %v916 = vld [vmem:[#allocation9 + $0x2c] sm:$0xf]
    %v917 = vld [vmem:[#allocation9 + $0x30] sm:$0xf]
    %v918 = vld [vmem:[#allocation9 + $0x34] sm:$0xf]
    %v919 = vld [vmem:[#allocation9 + $0x38] sm:$0xf]
    %v920 = vld [vmem:[#allocation9 + $0x3c] sm:$0xf]
    %v921 = vld [vmem:[#allocation14] sm:$0x1]
    %v923 = vlaneseq
    %v924 = vshrl.u32 %v923, 7
    %v925 = vsub.s32 0, %v924
    %v926 = vrot.slane %v921, %v925
    %v944 = vunpack.c.l.b16 %v905
    %v945 = vunpack.c.l.b16 %v906
    %v946 = vunpack.c.l.b16 %v907
    %v947 = vunpack.c.l.b16 %v908
    %v948 = vunpack.c.l.b16 %v909
    %v949 = vunpack.c.l.b16 %v910
    %v950 = vunpack.c.l.b16 %v911
    %v951 = vunpack.c.l.b16 %v912
    %v952 = vunpack.c.l.b16 %v913
    %v953 = vunpack.c.l.b16 %v914
    %v954 = vunpack.c.l.b16 %v915
    %v955 = vunpack.c.l.b16 %v916
    %v956 = vunpack.c.l.b16 %v917
    %v957 = vunpack.c.l.b16 %v918
    %v958 = vunpack.c.l.b16 %v919
    %v959 = vunpack.c.l.b16 %v920
    %v960 = vpack.c.b16 %v945, %v944
    %v961 = vpack.c.b16 %v947, %v946
    %v962 = vpack.c.b16 %v949, %v948
    %v963 = vpack.c.b16 %v951, %v950
    %v964 = vpack.c.b16 %v953, %v952
    %v965 = vpack.c.b16 %v955, %v954
    %v966 = vpack.c.b16 %v957, %v956
    %v967 = vpack.c.b16 %v959, %v958
    %976 = vmatprep.subr.bf16.mxu0 0
    %977 = vmatpush1.bf16.msra.mxu0 %v960
    %978 = vmatprep.subr.bf16.mxu0 0
    %979 = vmatpush1.bf16.msra.mxu0 %v961
    %980 = vmatprep.subr.bf16.mxu0 0
    %981 = vmatpush1.bf16.msra.mxu0 %v962
    %982 = vmatprep.subr.bf16.mxu0 0
    %983 = vmatpush1.bf16.msra.mxu0 %v963
    %984 = vmatprep.subr.bf16.mxu0 0
    %985 = vmatpush1.bf16.msra.mxu0 %v964
    %986 = vmatprep.subr.bf16.mxu0 0
    %987 = vmatpush1.bf16.msra.mxu0 %v965
    %988 = vmatprep.subr.bf16.mxu0 0
    %989 = vmatpush1.bf16.msra.mxu0 %v966
    %990 = vmatprep.subr.bf16.mxu0 0
    %991 = vmatpush1.bf16.msra.mxu0 %v967
    %992 = vmatprep.subr.bf16.mxu0 0
    %993 = vmatpush1.bf16.msra.mxu0 0
    %994 = vmatprep.subr.bf16.mxu0 0
    %995 = vmatpush1.bf16.msra.mxu0 0
    %996 = vmatprep.subr.bf16.mxu0 0
    %997 = vmatpush1.bf16.msra.mxu0 0
    %998 = vmatprep.subr.bf16.mxu0 0
    %999 = vmatpush1.bf16.msra.mxu0 0
    %1000 = vmatprep.subr.bf16.mxu0 0
    %1001 = vmatpush1.bf16.msra.mxu0 0
    %1002 = vmatprep.subr.bf16.mxu0 0
    %1003 = vmatpush1.bf16.msra.mxu0 0
    %1004 = vmatprep.subr.bf16.mxu0 0
    %1005 = vmatpush1.bf16.msra.mxu0 0
    %1006 = vmatprep.subr.bf16.mxu0 0
    %1007 = vmatpush1.bf16.msra.mxu0 0
    %1008 = vmatprep.mubr.bf16.mxu0 0
    %1009 = vmatmul.mubr.bf16.gmra.mrb[0].mxu0 %v713
    %v1010 = vpop.f32.mrb[0].mxu0
    %v1011 = vadd.f32 %v926, %v1010
    %v1012 = vpop.f32.mrb[0].mxu0
    %v1013 = vpop.f32.mrb[0].mxu0
    %v1014 = vadd.f32 %v926, %v1013
    %v1015 = vpop.f32.mrb[0].mxu0
    %1016 = vmatprep.mubr.bf16.mxu0 0
    %1017 = vmatmul.mubr.bf16.gmra.mrb[0].mxu0 %v714
    %v1018 = vpop.f32.mrb[0].mxu0
    %v1019 = vadd.f32 %v926, %v1018
    %v1020 = vpop.f32.mrb[0].mxu0
    %v1021 = vpop.f32.mrb[0].mxu0
    %v1022 = vadd.f32 %v926, %v1021
    %v1023 = vpop.f32.mrb[0].mxu0
    %1024 = vmatprep.mubr.bf16.mxu0 0
    %1025 = vmatmul.mubr.bf16.gmra.mrb[0].mxu0 %v715
    %v1026 = vpop.f32.mrb[0].mxu0
    %v1027 = vadd.f32 %v926, %v1026
    %v1028 = vpop.f32.mrb[0].mxu0
    %v1029 = vpop.f32.mrb[0].mxu0
    %v1030 = vadd.f32 %v926, %v1029
    %v1031 = vpop.f32.mrb[0].mxu0
    %1032 = vmatprep.mubr.bf16.mxu0 0
    %1033 = vmatmul.mubr.bf16.gmra.mrb[0].mxu0 %v716
    %v1034 = vpop.f32.mrb[0].mxu0
    %v1035 = vadd.f32 %v926, %v1034
    %v1036 = vpop.f32.mrb[0].mxu0
    %v1037 = vpop.f32.mrb[0].mxu0
    %v1038 = vadd.f32 %v926, %v1037
    %v1039 = vpop.f32.mrb[0].mxu0
    %1040 = vmatprep.mubr.bf16.mxu0 0
    %1041 = vmatmul.mubr.bf16.gmra.mrb[0].mxu0 %v717
    %v1042 = vpop.f32.mrb[0].mxu0
    %v1043 = vadd.f32 %v926, %v1042
    %v1044 = vpop.f32.mrb[0].mxu0
    %v1045 = vpop.f32.mrb[0].mxu0
    %v1046 = vadd.f32 %v926, %v1045
    %v1047 = vpop.f32.mrb[0].mxu0
    %1048 = vmatprep.mubr.bf16.mxu0 0
    %1049 = vmatmul.mubr.bf16.gmra.mrb[0].mxu0 %v718
    %v1050 = vpop.f32.mrb[0].mxu0
    %v1051 = vadd.f32 %v926, %v1050
    %v1052 = vpop.f32.mrb[0].mxu0
    %v1053 = vpop.f32.mrb[0].mxu0
    %v1054 = vadd.f32 %v926, %v1053
    %v1055 = vpop.f32.mrb[0].mxu0
    %1056 = vmatprep.mubr.bf16.mxu0 0
    %1057 = vmatmul.mubr.bf16.gmra.mrb[0].mxu0 %v719
    %v1058 = vpop.f32.mrb[0].mxu0
    %v1059 = vadd.f32 %v926, %v1058
    %v1060 = vpop.f32.mrb[0].mxu0
    %v1061 = vpop.f32.mrb[0].mxu0
    %v1062 = vadd.f32 %v926, %v1061
    %v1063 = vpop.f32.mrb[0].mxu0
    %1064 = vmatprep.mubr.bf16.mxu0 0
    %1065 = vmatmul.mubr.bf16.gmra.mrb[0].mxu0 %v720
    %v1066 = vpop.f32.mrb[0].mxu0
    %v1067 = vadd.f32 %v926, %v1066
    %v1068 = vpop.f32.mrb[0].mxu0
    %v1069 = vpop.f32.mrb[0].mxu0
    %v1070 = vadd.f32 %v926, %v1069
    %v1071 = vpop.f32.mrb[0].mxu0
    %1072 = vdwg.mxu0
    %v1073 = vpack.c.bf16 %v1014, %v1011
    %v1074 = vpack.c.bf16 %v1022, %v1019
    %v1075 = vpack.c.bf16 %v1030, %v1027
    %v1076 = vpack.c.bf16 %v1038, %v1035
    %v1077 = vpack.c.bf16 %v1046, %v1043
    %v1078 = vpack.c.bf16 %v1054, %v1051
    %v1079 = vpack.c.bf16 %v1062, %v1059
    %v1080 = vpack.c.bf16 %v1070, %v1067
    %v1081 = vld [vmem:[#allocation11] sm:$0xf]
    %v1082 = vld [vmem:[#allocation11 + $0x4] sm:$0xf]
    %v1083 = vld [vmem:[#allocation11 + $0x8] sm:$0xf]
    %v1084 = vld [vmem:[#allocation11 + $0xc] sm:$0xf]
    %v1085 = vld [vmem:[#allocation11 + $0x10] sm:$0xf]
    %v1086 = vld [vmem:[#allocation11 + $0x14] sm:$0xf]
    %v1087 = vld [vmem:[#allocation11 + $0x18] sm:$0xf]
    %v1088 = vld [vmem:[#allocation11 + $0x1c] sm:$0xf]
    %v1089 = vld [vmem:[#allocation11 + $0x20] sm:$0xf]
    %v1090 = vld [vmem:[#allocation11 + $0x24] sm:$0xf]
    %v1091 = vld [vmem:[#allocation11 + $0x28] sm:$0xf]
    %v1092 = vld [vmem:[#allocation11 + $0x2c] sm:$0xf]
    %v1093 = vld [vmem:[#allocation11 + $0x30] sm:$0xf]
    %v1094 = vld [vmem:[#allocation11 + $0x34] sm:$0xf]
    %v1095 = vld [vmem:[#allocation11 + $0x38] sm:$0xf]
    %v1096 = vld [vmem:[#allocation11 + $0x3c] sm:$0xf]
    %v1097 = vld [vmem:[#allocation15] sm:$0x1]
    %v1099 = vlaneseq
    %v1100 = vshrl.u32 %v1099, 7
    %v1101 = vsub.s32 0, %v1100
    %v1102 = vrot.slane %v1097, %v1101
    %v1120 = vunpack.c.l.b16 %v1081
    %v1121 = vunpack.c.l.b16 %v1082
    %v1122 = vunpack.c.l.b16 %v1083
    %v1123 = vunpack.c.l.b16 %v1084
    %v1124 = vunpack.c.l.b16 %v1085
    %v1125 = vunpack.c.l.b16 %v1086
    %v1126 = vunpack.c.l.b16 %v1087
    %v1127 = vunpack.c.l.b16 %v1088
    %v1128 = vunpack.c.l.b16 %v1089
    %v1129 = vunpack.c.l.b16 %v1090
    %v1130 = vunpack.c.l.b16 %v1091
    %v1131 = vunpack.c.l.b16 %v1092
    %v1132 = vunpack.c.l.b16 %v1093
    %v1133 = vunpack.c.l.b16 %v1094
    %v1134 = vunpack.c.l.b16 %v1095
    %v1135 = vunpack.c.l.b16 %v1096
    %v1136 = vpack.c.b16 %v1121, %v1120
    %v1137 = vpack.c.b16 %v1123, %v1122
    %v1138 = vpack.c.b16 %v1125, %v1124
    %v1139 = vpack.c.b16 %v1127, %v1126
    %v1140 = vpack.c.b16 %v1129, %v1128
    %v1141 = vpack.c.b16 %v1131, %v1130
    %v1142 = vpack.c.b16 %v1133, %v1132
    %v1143 = vpack.c.b16 %v1135, %v1134
    %1152 = vmatprep.subr.bf16.mxu0 0
    %1153 = vmatpush1.bf16.msra.mxu0 %v1136
    %1154 = vmatprep.subr.bf16.mxu0 0
    %1155 = vmatpush1.bf16.msra.mxu0 %v1137
    %1156 = vmatprep.subr.bf16.mxu0 0
    %1157 = vmatpush1.bf16.msra.mxu0 %v1138
    %1158 = vmatprep.subr.bf16.mxu0 0
    %1159 = vmatpush1.bf16.msra.mxu0 %v1139
    %1160 = vmatprep.subr.bf16.mxu0 0
    %1161 = vmatpush1.bf16.msra.mxu0 %v1140
    %1162 = vmatprep.subr.bf16.mxu0 0
    %1163 = vmatpush1.bf16.msra.mxu0 %v1141
    %1164 = vmatprep.subr.bf16.mxu0 0
    %1165 = vmatpush1.bf16.msra.mxu0 %v1142
    %1166 = vmatprep.subr.bf16.mxu0 0
    %1167 = vmatpush1.bf16.msra.mxu0 %v1143
    %1168 = vmatprep.subr.bf16.mxu0 0
    %1169 = vmatpush1.bf16.msra.mxu0 0
    %1170 = vmatprep.subr.bf16.mxu0 0
    %1171 = vmatpush1.bf16.msra.mxu0 0
    %1172 = vmatprep.subr.bf16.mxu0 0
    %1173 = vmatpush1.bf16.msra.mxu0 0
    %1174 = vmatprep.subr.bf16.mxu0 0
    %1175 = vmatpush1.bf16.msra.mxu0 0
    %1176 = vmatprep.subr.bf16.mxu0 0
    %1177 = vmatpush1.bf16.msra.mxu0 0
    %1178 = vmatprep.subr.bf16.mxu0 0
    %1179 = vmatpush1.bf16.msra.mxu0 0
    %1180 = vmatprep.subr.bf16.mxu0 0
    %1181 = vmatpush1.bf16.msra.mxu0 0
    %1182 = vmatprep.subr.bf16.mxu0 0
    %1183 = vmatpush1.bf16.msra.mxu0 0
    %1184 = vmatprep.mubr.bf16.mxu0 0
    %1185 = vmatmul.mubr.bf16.gmra.mrb[0].mxu0 %v713
    %v1186 = vpop.f32.mrb[0].mxu0
    %v1187 = vadd.f32 %v1102, %v1186
    %v1188 = vpop.f32.mrb[0].mxu0
    %v1189 = vpop.f32.mrb[0].mxu0
    %v1190 = vadd.f32 %v1102, %v1189
    %v1191 = vpop.f32.mrb[0].mxu0
    %1192 = vmatprep.mubr.bf16.mxu0 0
    %1193 = vmatmul.mubr.bf16.gmra.mrb[0].mxu0 %v714
    %v1194 = vpop.f32.mrb[0].mxu0
    %v1195 = vadd.f32 %v1102, %v1194
    %v1196 = vpop.f32.mrb[0].mxu0
    %v1197 = vpop.f32.mrb[0].mxu0
    %v1198 = vadd.f32 %v1102, %v1197
    %v1199 = vpop.f32.mrb[0].mxu0
    %1200 = vmatprep.mubr.bf16.mxu0 0
    %1201 = vmatmul.mubr.bf16.gmra.mrb[0].mxu0 %v715
    %v1202 = vpop.f32.mrb[0].mxu0
    %v1203 = vadd.f32 %v1102, %v1202
    %v1204 = vpop.f32.mrb[0].mxu0
    %v1205 = vpop.f32.mrb[0].mxu0
    %v1206 = vadd.f32 %v1102, %v1205
    %v1207 = vpop.f32.mrb[0].mxu0
    %1208 = vmatprep.mubr.bf16.mxu0 0
    %1209 = vmatmul.mubr.bf16.gmra.mrb[0].mxu0 %v716
    %v1210 = vpop.f32.mrb[0].mxu0
    %v1211 = vadd.f32 %v1102, %v1210
    %v1212 = vpop.f32.mrb[0].mxu0
    %v1213 = vpop.f32.mrb[0].mxu0
    %v1214 = vadd.f32 %v1102, %v1213
    %v1215 = vpop.f32.mrb[0].mxu0
    %1216 = vmatprep.mubr.bf16.mxu0 0
    %1217 = vmatmul.mubr.bf16.gmra.mrb[0].mxu0 %v717
    %v1218 = vpop.f32.mrb[0].mxu0
    %v1219 = vadd.f32 %v1102, %v1218
    %v1220 = vpop.f32.mrb[0].mxu0
    %v1221 = vpop.f32.mrb[0].mxu0
    %v1222 = vadd.f32 %v1102, %v1221
    %v1223 = vpop.f32.mrb[0].mxu0
    %1224 = vmatprep.mubr.bf16.mxu0 0
    %1225 = vmatmul.mubr.bf16.gmra.mrb[0].mxu0 %v718
    %v1226 = vpop.f32.mrb[0].mxu0
    %v1227 = vadd.f32 %v1102, %v1226
    %v1228 = vpop.f32.mrb[0].mxu0
    %v1229 = vpop.f32.mrb[0].mxu0
    %v1230 = vadd.f32 %v1102, %v1229
    %v1231 = vpop.f32.mrb[0].mxu0
    %1232 = vmatprep.mubr.bf16.mxu0 0
    %1233 = vmatmul.mubr.bf16.gmra.mrb[0].mxu0 %v719
    %v1234 = vpop.f32.mrb[0].mxu0
    %v1235 = vadd.f32 %v1102, %v1234
    %v1236 = vpop.f32.mrb[0].mxu0
    %v1237 = vpop.f32.mrb[0].mxu0
    %v1238 = vadd.f32 %v1102, %v1237
    %v1239 = vpop.f32.mrb[0].mxu0
    %1240 = vmatprep.mubr.bf16.mxu0 0
    %1241 = vmatmul.mubr.bf16.gmra.mrb[0].mxu0 %v720
    %v1242 = vpop.f32.mrb[0].mxu0
    %v1243 = vadd.f32 %v1102, %v1242
    %v1244 = vpop.f32.mrb[0].mxu0
    %v1245 = vpop.f32.mrb[0].mxu0
    %v1246 = vadd.f32 %v1102, %v1245
    %v1247 = vpop.f32.mrb[0].mxu0
    %1248 = vdwg.mxu0
    %v1249 = vpack.c.bf16 %v1190, %v1187
    %v1250 = vpack.c.bf16 %v1198, %v1195
    %v1251 = vpack.c.bf16 %v1206, %v1203
    %v1252 = vpack.c.bf16 %v1214, %v1211
    %v1253 = vpack.c.bf16 %v1222, %v1219
    %v1254 = vpack.c.bf16 %v1230, %v1227
    %v1255 = vpack.c.bf16 %v1238, %v1235
    %v1256 = vpack.c.bf16 %v1246, %v1243
    %v1257 = vld [vmem:[#allocation17] sm:$0xf]
    %v1258 = vld [vmem:[#allocation17 + $0x4] sm:$0xf]
    %v1259 = vld [vmem:[#allocation17 + $0x8] sm:$0xf]
    %v1260 = vld [vmem:[#allocation17 + $0xc] sm:$0xf]
    %v1261 = vld [vmem:[#allocation17 + $0x10] sm:$0xf]
    %v1262 = vld [vmem:[#allocation17 + $0x14] sm:$0xf]
    %v1263 = vld [vmem:[#allocation17 + $0x18] sm:$0xf]
    %v1264 = vld [vmem:[#allocation17 + $0x1c] sm:$0xf]
    %v1265 = vld [vmem:[#allocation17 + $0x20] sm:$0xf]
    %v1266 = vld [vmem:[#allocation17 + $0x24] sm:$0xf]
    %v1267 = vld [vmem:[#allocation17 + $0x28] sm:$0xf]
    %v1268 = vld [vmem:[#allocation17 + $0x2c] sm:$0xf]
    %v1269 = vld [vmem:[#allocation17 + $0x30] sm:$0xf]
    %v1270 = vld [vmem:[#allocation17 + $0x34] sm:$0xf]
    %v1271 = vld [vmem:[#allocation17 + $0x38] sm:$0xf]
    %v1272 = vld [vmem:[#allocation17 + $0x3c] sm:$0xf]
    %v1273 = vld [vmem:[#allocation18] sm:$0x1]
    %v1274 = vld [vmem:[#allocation2] sm:$0xff]
    %v1275 = vld [vmem:[#allocation2 + $0x8] sm:$0xff]
    %v1276 = vld [vmem:[#allocation2 + $0x10] sm:$0xff]
    %v1277 = vld [vmem:[#allocation2 + $0x18] sm:$0xff]
    %v1278 = vld [vmem:[#allocation2 + $0x20] sm:$0xff]
    %v1279 = vld [vmem:[#allocation2 + $0x28] sm:$0xff]
    %v1280 = vld [vmem:[#allocation2 + $0x30] sm:$0xff]
    %v1281 = vld [vmem:[#allocation2 + $0x38] sm:$0xff]
    %1282 = vmatprep.subr.bf16.mxu0 0
    %1283 = vmatpush1.bf16.xpose.msra.mxu0 %v1073
    %1284 = vmatprep.subr.bf16.mxu0 0
    %1285 = vmatpush1.bf16.xpose.msra.mxu0 %v1074
    %1286 = vmatprep.subr.bf16.mxu0 0
    %1287 = vmatpush1.bf16.xpose.msra.mxu0 %v1075
    %1288 = vmatprep.subr.bf16.mxu0 0
    %1289 = vmatpush1.bf16.xpose.msra.mxu0 %v1076
    %1290 = vmatprep.subr.bf16.mxu0 0
    %1291 = vmatpush1.bf16.xpose.msra.mxu0 0
    %1292 = vmatprep.subr.bf16.mxu0 0
    %1293 = vmatpush1.bf16.xpose.msra.mxu0 0
    %1294 = vmatprep.subr.bf16.mxu0 0
    %1295 = vmatpush1.bf16.xpose.msra.mxu0 0
    %1296 = vmatprep.subr.bf16.mxu0 0
    %1297 = vmatpush1.bf16.xpose.msra.mxu0 0
    %1298 = vmatprep.subr.bf16.mxu0 0
    %1299 = vmatpush1.bf16.xpose.msra.mxu0 0
    %1300 = vmatprep.subr.bf16.mxu0 0
    %1301 = vmatpush1.bf16.xpose.msra.mxu0 0
    %1302 = vmatprep.subr.bf16.mxu0 0
    %1303 = vmatpush1.bf16.xpose.msra.mxu0 0
    %1304 = vmatprep.subr.bf16.mxu0 0
    %1305 = vmatpush1.bf16.xpose.msra.mxu0 0
    %1306 = vmatprep.subr.bf16.mxu0 0
    %1307 = vmatpush1.bf16.xpose.msra.mxu0 0
    %1308 = vmatprep.subr.bf16.mxu0 0
    %1309 = vmatpush1.bf16.xpose.msra.mxu0 0
    %1310 = vmatprep.subr.bf16.mxu0 0
    %1311 = vmatpush1.bf16.xpose.msra.mxu0 0
    %1312 = vmatprep.subr.bf16.mxu0 0
    %1313 = vmatpush1.bf16.xpose.msra.mxu0 0
    %1314 = vmatprep.mubr.bf16.mxu0 0
    %1315 = vmatmul.mubr.bf16.gmra.mrb[0].mxu0 %v1274
    %v1316 = vpop.f32.mrb[0].mxu0
    %v1317 = vadd.f32 0.0, %v1316
    %v1318 = vpop.f32.mrb[0].mxu0
    %v1319 = vpop.f32.mrb[0].mxu0
    %v1320 = vadd.f32 0.0, %v1319
    %v1321 = vpop.f32.mrb[0].mxu0
    %1322 = vmatprep.mubr.bf16.mxu0 0
    %1323 = vmatmul.mubr.bf16.gmra.mrb[0].mxu0 %v1275
    %v1324 = vpop.f32.mrb[0].mxu0
    %v1325 = vadd.f32 0.0, %v1324
    %v1326 = vpop.f32.mrb[0].mxu0
    %v1327 = vpop.f32.mrb[0].mxu0
    %v1328 = vadd.f32 0.0, %v1327
    %v1329 = vpop.f32.mrb[0].mxu0
    %1330 = vmatprep.mubr.bf16.mxu0 0
    %1331 = vmatmul.mubr.bf16.gmra.mrb[0].mxu0 %v1276
    %v1332 = vpop.f32.mrb[0].mxu0
    %v1333 = vadd.f32 0.0, %v1332
    %v1334 = vpop.f32.mrb[0].mxu0
    %v1335 = vpop.f32.mrb[0].mxu0
    %v1336 = vadd.f32 0.0, %v1335
    %v1337 = vpop.f32.mrb[0].mxu0
    %1338 = vmatprep.mubr.bf16.mxu0 0
    %1339 = vmatmul.mubr.bf16.gmra.mrb[0].mxu0 %v1277
    %v1340 = vpop.f32.mrb[0].mxu0
    %v1341 = vadd.f32 0.0, %v1340
    %v1342 = vpop.f32.mrb[0].mxu0
    %v1343 = vpop.f32.mrb[0].mxu0
    %v1344 = vadd.f32 0.0, %v1343
    %v1345 = vpop.f32.mrb[0].mxu0
    %1346 = vdwg.mxu0
    %1347 = vmatprep.subr.bf16.mxu0 0
    %1348 = vmatpush1.bf16.xpose.msra.mxu0 %v1077
    %1349 = vmatprep.subr.bf16.mxu0 0
    %1350 = vmatpush1.bf16.xpose.msra.mxu0 %v1078
    %1351 = vmatprep.subr.bf16.mxu0 0
    %1352 = vmatpush1.bf16.xpose.msra.mxu0 %v1079
    %1353 = vmatprep.subr.bf16.mxu0 0
    %1354 = vmatpush1.bf16.xpose.msra.mxu0 %v1080
    %1355 = vmatprep.subr.bf16.mxu0 0
    %1356 = vmatpush1.bf16.xpose.msra.mxu0 0
    %1357 = vmatprep.subr.bf16.mxu0 0
    %1358 = vmatpush1.bf16.xpose.msra.mxu0 0
    %1359 = vmatprep.subr.bf16.mxu0 0
    %1360 = vmatpush1.bf16.xpose.msra.mxu0 0
    %1361 = vmatprep.subr.bf16.mxu0 0
    %1362 = vmatpush1.bf16.xpose.msra.mxu0 0
    %1363 = vmatprep.subr.bf16.mxu0 0
    %1364 = vmatpush1.bf16.xpose.msra.mxu0 0
    %1365 = vmatprep.subr.bf16.mxu0 0
    %1366 = vmatpush1.bf16.xpose.msra.mxu0 0
    %1367 = vmatprep.subr.bf16.mxu0 0
    %1368 = vmatpush1.bf16.xpose.msra.mxu0 0
    %1369 = vmatprep.subr.bf16.mxu0 0
    %1370 = vmatpush1.bf16.xpose.msra.mxu0 0
    %1371 = vmatprep.subr.bf16.mxu0 0
    %1372 = vmatpush1.bf16.xpose.msra.mxu0 0
    %1373 = vmatprep.subr.bf16.mxu0 0
    %1374 = vmatpush1.bf16.xpose.msra.mxu0 0
    %1375 = vmatprep.subr.bf16.mxu0 0
    %1376 = vmatpush1.bf16.xpose.msra.mxu0 0
    %1377 = vmatprep.subr.bf16.mxu0 0
    %1378 = vmatpush1.bf16.xpose.msra.mxu0 0
    %1379 = vmatprep.mubr.bf16.mxu0 0
    %1380 = vmatmul.mubr.bf16.gmra.mrb[0].mxu0 %v1278
    %v1381 = vpop.f32.mrb[0].mxu0
    %v1382 = vadd.f32 0.0, %v1381
    %v1383 = vpop.f32.mrb[0].mxu0
    %v1384 = vpop.f32.mrb[0].mxu0
    %v1385 = vadd.f32 0.0, %v1384
    %v1386 = vpop.f32.mrb[0].mxu0
    %1387 = vmatprep.mubr.bf16.mxu0 0
    %1388 = vmatmul.mubr.bf16.gmra.mrb[0].mxu0 %v1279
    %v1389 = vpop.f32.mrb[0].mxu0
    %v1390 = vadd.f32 0.0, %v1389
    %v1391 = vpop.f32.mrb[0].mxu0
    %v1392 = vpop.f32.mrb[0].mxu0
    %v1393 = vadd.f32 0.0, %v1392
    %v1394 = vpop.f32.mrb[0].mxu0
    %1395 = vmatprep.mubr.bf16.mxu0 0
    %1396 = vmatmul.mubr.bf16.gmra.mrb[0].mxu0 %v1280
    %v1397 = vpop.f32.mrb[0].mxu0
    %v1398 = vadd.f32 0.0, %v1397
    %v1399 = vpop.f32.mrb[0].mxu0
    %v1400 = vpop.f32.mrb[0].mxu0
    %v1401 = vadd.f32 0.0, %v1400
    %v1402 = vpop.f32.mrb[0].mxu0
    %1403 = vmatprep.mubr.bf16.mxu0 0
    %1404 = vmatmul.mubr.bf16.gmra.mrb[0].mxu0 %v1281
    %v1405 = vpop.f32.mrb[0].mxu0
    %v1406 = vadd.f32 0.0, %v1405
    %v1407 = vpop.f32.mrb[0].mxu0
    %v1408 = vpop.f32.mrb[0].mxu0
    %v1409 = vadd.f32 0.0, %v1408
    %v1410 = vpop.f32.mrb[0].mxu0
    %1411 = vdwg.mxu0
    %vm1412 = vcmask 523264
    %v1413 = vsel %vm1412, %v1317, -inf
    %1414 = vmax.xlane.f32.xlu0 %v1413
    %v1415 = vpop.xlane.xlu0 %1414
    %v1416 = vsel %vm1412, %v1320, -inf
    %1417 = vmax.xlane.f32.xlu0 %v1416
    %v1418 = vpop.xlane.xlu0 %1417
    %v1419 = vsel %vm1412, %v1325, -inf
    %1420 = vmax.xlane.f32.xlu0 %v1419
    %v1421 = vpop.xlane.xlu0 %1420
    %v1422 = vsel %vm1412, %v1328, -inf
    %1423 = vmax.xlane.f32.xlu0 %v1422
    %v1424 = vpop.xlane.xlu0 %1423
    %v1425 = vsel %vm1412, %v1333, -inf
    %1426 = vmax.xlane.f32.xlu0 %v1425
    %v1427 = vpop.xlane.xlu0 %1426
    %v1428 = vsel %vm1412, %v1336, -inf
    %1429 = vmax.xlane.f32.xlu0 %v1428
    %v1430 = vpop.xlane.xlu0 %1429
    %v1431 = vsel %vm1412, %v1341, -inf
    %1432 = vmax.xlane.f32.xlu0 %v1431
    %v1433 = vpop.xlane.xlu0 %1432
    %v1434 = vsel %vm1412, %v1344, -inf
    %1435 = vmax.xlane.f32.xlu0 %v1434
    %v1436 = vpop.xlane.xlu0 %1435
    %v1437 = vsel %vm1412, %v1382, -inf
    %1438 = vmax.xlane.f32.xlu0 %v1437
    %v1439 = vpop.xlane.xlu0 %1438
    %v1440 = vsel %vm1412, %v1385, -inf
    %1441 = vmax.xlane.f32.xlu0 %v1440
    %v1442 = vpop.xlane.xlu0 %1441
    %v1443 = vsel %vm1412, %v1390, -inf
    %1444 = vmax.xlane.f32.xlu0 %v1443
    %v1445 = vpop.xlane.xlu0 %1444
    %v1446 = vsel %vm1412, %v1393, -inf
    %1447 = vmax.xlane.f32.xlu0 %v1446
    %v1448 = vpop.xlane.xlu0 %1447
    %v1449 = vsel %vm1412, %v1398, -inf
    %1450 = vmax.xlane.f32.xlu0 %v1449
    %v1451 = vpop.xlane.xlu0 %1450
    %v1452 = vsel %vm1412, %v1401, -inf
    %1453 = vmax.xlane.f32.xlu0 %v1452
    %v1454 = vpop.xlane.xlu0 %1453
    %v1455 = vsel %vm1412, %v1406, -inf
    %1456 = vmax.xlane.f32.xlu0 %v1455
    %v1457 = vpop.xlane.xlu0 %1456
    %v1458 = vsel %vm1412, %v1409, -inf
    %1459 = vmax.xlane.f32.xlu0 %v1458
    %v1460 = vpop.xlane.xlu0 %1459
    %v1461 = vsub.f32 %v1317, %v1415
    %v1462 = vsub.f32 %v1320, %v1418
    %v1463 = vsub.f32 %v1325, %v1421
    %v1464 = vsub.f32 %v1328, %v1424
    %v1465 = vsub.f32 %v1333, %v1427
    %v1466 = vsub.f32 %v1336, %v1430
    %v1467 = vsub.f32 %v1341, %v1433
    %v1468 = vsub.f32 %v1344, %v1436
    %v1469 = vsub.f32 %v1382, %v1439
    %v1470 = vsub.f32 %v1385, %v1442
    %v1471 = vsub.f32 %v1390, %v1445
    %v1472 = vsub.f32 %v1393, %v1448
    %v1473 = vsub.f32 %v1398, %v1451
    %v1474 = vsub.f32 %v1401, %v1454
    %v1475 = vsub.f32 %v1406, %v1457
    %v1476 = vsub.f32 %v1409, %v1460
    %v1477 = vmul.f32 %v1461, 1.442695
    %v1478 = vpow.pop %v1477
    %v1479 = vmul.f32 %v1462, 1.442695
    %v1480 = vpow.pop %v1479
    %v1481 = vmul.f32 %v1463, 1.442695
    %v1482 = vpow.pop %v1481
    %v1483 = vmul.f32 %v1464, 1.442695
    %v1484 = vpow.pop %v1483
    %v1485 = vmul.f32 %v1465, 1.442695
    %v1486 = vpow.pop %v1485
    %v1487 = vmul.f32 %v1466, 1.442695
    %v1488 = vpow.pop %v1487
    %v1489 = vmul.f32 %v1467, 1.442695
    %v1490 = vpow.pop %v1489
    %v1491 = vmul.f32 %v1468, 1.442695
    %v1492 = vpow.pop %v1491
    %v1493 = vmul.f32 %v1469, 1.442695
    %v1494 = vpow.pop %v1493
    %v1495 = vmul.f32 %v1470, 1.442695
    %v1496 = vpow.pop %v1495
    %v1497 = vmul.f32 %v1471, 1.442695
    %v1498 = vpow.pop %v1497
    %v1499 = vmul.f32 %v1472, 1.442695
    %v1500 = vpow.pop %v1499
    %v1501 = vmul.f32 %v1473, 1.442695
    %v1502 = vpow.pop %v1501
    %v1503 = vmul.f32 %v1474, 1.442695
    %v1504 = vpow.pop %v1503
    %v1505 = vmul.f32 %v1475, 1.442695
    %v1506 = vpow.pop %v1505
    %v1507 = vmul.f32 %v1476, 1.442695
    %v1508 = vpow.pop %v1507
    %v1509 = vsel %vm1412, %v1478, 0.0
    %1510 = vadd.xlane.f32.xlu0 %v1509
    %v1511 = vpop.xlane.xlu0 %1510
    %v1512 = vsel %vm1412, %v1480, 0.0
    %1513 = vadd.xlane.f32.xlu0 %v1512
    %v1514 = vpop.xlane.xlu0 %1513
    %v1515 = vsel %vm1412, %v1482, 0.0
    %1516 = vadd.xlane.f32.xlu0 %v1515
    %v1517 = vpop.xlane.xlu0 %1516
    %v1518 = vsel %vm1412, %v1484, 0.0
    %1519 = vadd.xlane.f32.xlu0 %v1518
    %v1520 = vpop.xlane.xlu0 %1519
    %v1521 = vsel %vm1412, %v1486, 0.0
    %1522 = vadd.xlane.f32.xlu0 %v1521
    %v1523 = vpop.xlane.xlu0 %1522
    %v1524 = vsel %vm1412, %v1488, 0.0
    %1525 = vadd.xlane.f32.xlu0 %v1524
    %v1526 = vpop.xlane.xlu0 %1525
    %v1527 = vsel %vm1412, %v1490, 0.0
    %1528 = vadd.xlane.f32.xlu0 %v1527
    %v1529 = vpop.xlane.xlu0 %1528
    %v1530 = vsel %vm1412, %v1492, 0.0
    %1531 = vadd.xlane.f32.xlu0 %v1530
    %v1532 = vpop.xlane.xlu0 %1531
    %v1533 = vsel %vm1412, %v1494, 0.0
    %1534 = vadd.xlane.f32.xlu0 %v1533
    %v1535 = vpop.xlane.xlu0 %1534
    %v1536 = vsel %vm1412, %v1496, 0.0
    %1537 = vadd.xlane.f32.xlu0 %v1536
    %v1538 = vpop.xlane.xlu0 %1537
    %v1539 = vsel %vm1412, %v1498, 0.0
    %1540 = vadd.xlane.f32.xlu0 %v1539
    %v1541 = vpop.xlane.xlu0 %1540
    %v1542 = vsel %vm1412, %v1500, 0.0
    %1543 = vadd.xlane.f32.xlu0 %v1542
    %v1544 = vpop.xlane.xlu0 %1543
    %v1545 = vsel %vm1412, %v1502, 0.0
    %1546 = vadd.xlane.f32.xlu0 %v1545
    %v1547 = vpop.xlane.xlu0 %1546
    %v1548 = vsel %vm1412, %v1504, 0.0
    %1549 = vadd.xlane.f32.xlu0 %v1548
    %v1550 = vpop.xlane.xlu0 %1549
    %v1551 = vsel %vm1412, %v1506, 0.0
    %1552 = vadd.xlane.f32.xlu0 %v1551
    %v1553 = vpop.xlane.xlu0 %1552
    %v1554 = vsel %vm1412, %v1508, 0.0
    %1555 = vadd.xlane.f32.xlu0 %v1554
    %v1556 = vpop.xlane.xlu0 %1555
    %v1557 = vpack.c.bf16 %v1480, %v1478
    %v1558 = vpack.c.bf16 %v1484, %v1482
    %v1559 = vpack.c.bf16 %v1488, %v1486
    %v1560 = vpack.c.bf16 %v1492, %v1490
    %v1561 = vpack.c.bf16 %v1496, %v1494
    %v1562 = vpack.c.bf16 %v1500, %v1498
    %v1563 = vpack.c.bf16 %v1504, %v1502
    %v1564 = vpack.c.bf16 %v1508, %v1506
    %v1566 = vsel %vm1412, %v1557, 0
    %v1569 = vsel %vm1412, %v1558, 0
    %v1572 = vsel %vm1412, %v1559, 0
    %v1575 = vsel %vm1412, %v1560, 0
    %1577 = vmatprep.subr.bf16.mxu0 0
    %1578 = vmatpush1.bf16.msra.mxu0 %v1249
    %1579 = vmatprep.subr.bf16.mxu0 0
    %1580 = vmatpush1.bf16.msra.mxu0 %v1250
    %1581 = vmatprep.subr.bf16.mxu0 0
    %1582 = vmatpush1.bf16.msra.mxu0 %v1251
    %1583 = vmatprep.subr.bf16.mxu0 0
    %1584 = vmatpush1.bf16.msra.mxu0 %v1252
    %1585 = vmatprep.subr.bf16.mxu0 0
    %1586 = vmatpush1.bf16.msra.mxu0 0
    %1587 = vmatprep.subr.bf16.mxu0 0
    %1588 = vmatpush1.bf16.msra.mxu0 0
    %1589 = vmatprep.subr.bf16.mxu0 0
    %1590 = vmatpush1.bf16.msra.mxu0 0
    %1591 = vmatprep.subr.bf16.mxu0 0
    %1592 = vmatpush1.bf16.msra.mxu0 0
    %1593 = vmatprep.subr.bf16.mxu0 0
    %1594 = vmatpush1.bf16.msra.mxu0 0
    %1595 = vmatprep.subr.bf16.mxu0 0
    %1596 = vmatpush1.bf16.msra.mxu0 0
    %1597 = vmatprep.subr.bf16.mxu0 0
    %1598 = vmatpush1.bf16.msra.mxu0 0
    %1599 = vmatprep.subr.bf16.mxu0 0
    %1600 = vmatpush1.bf16.msra.mxu0 0
    %1601 = vmatprep.subr.bf16.mxu0 0
    %1602 = vmatpush1.bf16.msra.mxu0 0
    %1603 = vmatprep.subr.bf16.mxu0 0
    %1604 = vmatpush1.bf16.msra.mxu0 0
    %1605 = vmatprep.subr.bf16.mxu0 0
    %1606 = vmatpush1.bf16.msra.mxu0 0
    %1607 = vmatprep.subr.bf16.mxu0 0
    %1608 = vmatpush1.bf16.msra.mxu0 0
    %1609 = vmatprep.mubr.bf16.mxu0 0
    %1610 = vmatmul.mubr.bf16.gmra.mrb[0].mxu0 %v1566
    %v1611 = vpop.f32.mrb[0].mxu0
    %v1612 = vadd.f32 0.0, %v1611
    %v1613 = vpop.f32.mrb[0].mxu0
    %v1614 = vpop.f32.mrb[0].mxu0
    %v1615 = vadd.f32 0.0, %v1614
    %v1616 = vpop.f32.mrb[0].mxu0
    %1617 = vmatprep.mubr.bf16.mxu0 0
    %1618 = vmatmul.mubr.bf16.gmra.mrb[0].mxu0 %v1569
    %v1619 = vpop.f32.mrb[0].mxu0
    %v1620 = vadd.f32 0.0, %v1619
    %v1621 = vpop.f32.mrb[0].mxu0
    %v1622 = vpop.f32.mrb[0].mxu0
    %v1623 = vadd.f32 0.0, %v1622
    %v1624 = vpop.f32.mrb[0].mxu0
    %1625 = vmatprep.mubr.bf16.mxu0 0
    %1626 = vmatmul.mubr.bf16.gmra.mrb[0].mxu0 %v1572
    %v1627 = vpop.f32.mrb[0].mxu0
    %v1628 = vadd.f32 0.0, %v1627
    %v1629 = vpop.f32.mrb[0].mxu0
    %v1630 = vpop.f32.mrb[0].mxu0
    %v1631 = vadd.f32 0.0, %v1630
    %v1632 = vpop.f32.mrb[0].mxu0
    %1633 = vmatprep.mubr.bf16.mxu0 0
    %1634 = vmatmul.mubr.bf16.gmra.mrb[0].mxu0 %v1575
    %v1635 = vpop.f32.mrb[0].mxu0
    %v1636 = vadd.f32 0.0, %v1635
    %v1637 = vpop.f32.mrb[0].mxu0
    %v1638 = vpop.f32.mrb[0].mxu0
    %v1639 = vadd.f32 0.0, %v1638
    %v1640 = vpop.f32.mrb[0].mxu0
    %1641 = vdwg.mxu0
    %v1643 = vsel %vm1412, %v1561, 0
    %v1646 = vsel %vm1412, %v1562, 0
    %v1649 = vsel %vm1412, %v1563, 0
    %v1652 = vsel %vm1412, %v1564, 0
    %1654 = vmatprep.subr.bf16.mxu0 0
    %1655 = vmatpush1.bf16.msra.mxu0 %v1253
    %1656 = vmatprep.subr.bf16.mxu0 0
    %1657 = vmatpush1.bf16.msra.mxu0 %v1254
    %1658 = vmatprep.subr.bf16.mxu0 0
    %1659 = vmatpush1.bf16.msra.mxu0 %v1255
    %1660 = vmatprep.subr.bf16.mxu0 0
    %1661 = vmatpush1.bf16.msra.mxu0 %v1256
    %1662 = vmatprep.subr.bf16.mxu0 0
    %1663 = vmatpush1.bf16.msra.mxu0 0
    %1664 = vmatprep.subr.bf16.mxu0 0
    %1665 = vmatpush1.bf16.msra.mxu0 0
    %1666 = vmatprep.subr.bf16.mxu0 0
    %1667 = vmatpush1.bf16.msra.mxu0 0
    %1668 = vmatprep.subr.bf16.mxu0 0
    %1669 = vmatpush1.bf16.msra.mxu0 0
    %1670 = vmatprep.subr.bf16.mxu0 0
    %1671 = vmatpush1.bf16.msra.mxu0 0
    %1672 = vmatprep.subr.bf16.mxu0 0
    %1673 = vmatpush1.bf16.msra.mxu0 0
    %1674 = vmatprep.subr.bf16.mxu0 0
    %1675 = vmatpush1.bf16.msra.mxu0 0
    %1676 = vmatprep.subr.bf16.mxu0 0
    %1677 = vmatpush1.bf16.msra.mxu0 0
    %1678 = vmatprep.subr.bf16.mxu0 0
    %1679 = vmatpush1.bf16.msra.mxu0 0
    %1680 = vmatprep.subr.bf16.mxu0 0
    %1681 = vmatpush1.bf16.msra.mxu0 0
    %1682 = vmatprep.subr.bf16.mxu0 0
    %1683 = vmatpush1.bf16.msra.mxu0 0
    %1684 = vmatprep.subr.bf16.mxu0 0
    %1685 = vmatpush1.bf16.msra.mxu0 0
    %1686 = vmatprep.mubr.bf16.mxu0 0
    %1687 = vmatmul.mubr.bf16.gmra.mrb[0].mxu0 %v1643
    %v1688 = vpop.f32.mrb[0].mxu0
    %v1689 = vadd.f32 0.0, %v1688
    %v1690 = vpop.f32.mrb[0].mxu0
    %v1691 = vpop.f32.mrb[0].mxu0
    %v1692 = vadd.f32 0.0, %v1691
    %v1693 = vpop.f32.mrb[0].mxu0
    %1694 = vmatprep.mubr.bf16.mxu0 0
    %1695 = vmatmul.mubr.bf16.gmra.mrb[0].mxu0 %v1646
    %v1696 = vpop.f32.mrb[0].mxu0
    %v1697 = vadd.f32 0.0, %v1696
    %v1698 = vpop.f32.mrb[0].mxu0
    %v1699 = vpop.f32.mrb[0].mxu0
    %v1700 = vadd.f32 0.0, %v1699
    %v1701 = vpop.f32.mrb[0].mxu0
    %1702 = vmatprep.mubr.bf16.mxu0 0
    %1703 = vmatmul.mubr.bf16.gmra.mrb[0].mxu0 %v1649
    %v1704 = vpop.f32.mrb[0].mxu0
    %v1705 = vadd.f32 0.0, %v1704
    %v1706 = vpop.f32.mrb[0].mxu0
    %v1707 = vpop.f32.mrb[0].mxu0
    %v1708 = vadd.f32 0.0, %v1707
    %v1709 = vpop.f32.mrb[0].mxu0
    %1710 = vmatprep.mubr.bf16.mxu0 0
    %1711 = vmatmul.mubr.bf16.gmra.mrb[0].mxu0 %v1652
    %v1712 = vpop.f32.mrb[0].mxu0
    %v1713 = vadd.f32 0.0, %v1712
    %v1714 = vpop.f32.mrb[0].mxu0
    %v1715 = vpop.f32.mrb[0].mxu0
    %v1716 = vadd.f32 0.0, %v1715
    %v1717 = vpop.f32.mrb[0].mxu0
    %1718 = vdwg.mxu0
    %v1719 = vrcp.pop %v1511
    %v1720 = vrcp.pop %v1514
    %v1721 = vrcp.pop %v1517
    %v1722 = vrcp.pop %v1520
    %v1723 = vrcp.pop %v1523
    %v1724 = vrcp.pop %v1526
    %v1725 = vrcp.pop %v1529
    %v1726 = vrcp.pop %v1532
    %v1727 = vrcp.pop %v1535
    %v1728 = vrcp.pop %v1538
    %v1729 = vrcp.pop %v1541
    %v1730 = vrcp.pop %v1544
    %v1731 = vrcp.pop %v1547
    %v1732 = vrcp.pop %v1550
    %v1733 = vrcp.pop %v1553
    %v1734 = vrcp.pop %v1556
    %v1735 = vmul.f32 %v1612, %v1719
    %v1736 = vmul.f32 %v1615, %v1720
    %v1737 = vmul.f32 %v1620, %v1721
    %v1738 = vmul.f32 %v1623, %v1722
    %v1739 = vmul.f32 %v1628, %v1723
    %v1740 = vmul.f32 %v1631, %v1724
    %v1741 = vmul.f32 %v1636, %v1725
    %v1742 = vmul.f32 %v1639, %v1726
    %v1743 = vmul.f32 %v1689, %v1727
    %v1744 = vmul.f32 %v1692, %v1728
    %v1745 = vmul.f32 %v1697, %v1729
    %v1746 = vmul.f32 %v1700, %v1730
    %v1747 = vmul.f32 %v1705, %v1731
    %v1748 = vmul.f32 %v1708, %v1732
    %v1749 = vmul.f32 %v1713, %v1733
    %v1750 = vmul.f32 %v1716, %v1734
    %v1751 = vpack.c.bf16 %v1736, %v1735
    %v1752 = vpack.c.bf16 %v1738, %v1737
    %v1753 = vpack.c.bf16 %v1740, %v1739
    %v1754 = vpack.c.bf16 %v1742, %v1741
    %v1755 = vpack.c.bf16 %v1744, %v1743
    %v1756 = vpack.c.bf16 %v1746, %v1745
    %v1757 = vpack.c.bf16 %v1748, %v1747
    %v1758 = vpack.c.bf16 %v1750, %v1749
    %v1760 = vlaneseq
    %v1761 = vshrl.u32 %v1760, 7
    %v1762 = vsub.s32 0, %v1761
    %v1763 = vrot.slane %v1273, %v1762
    %v1781 = vunpack.c.l.b16 %v1257
    %v1782 = vunpack.c.l.b16 %v1258
    %v1783 = vunpack.c.l.b16 %v1259
    %v1784 = vunpack.c.l.b16 %v1260
    %v1785 = vunpack.c.l.b16 %v1261
    %v1786 = vunpack.c.l.b16 %v1262
    %v1787 = vunpack.c.l.b16 %v1263
    %v1788 = vunpack.c.l.b16 %v1264
    %v1789 = vunpack.c.l.b16 %v1265
    %v1790 = vunpack.c.l.b16 %v1266
    %v1791 = vunpack.c.l.b16 %v1267
    %v1792 = vunpack.c.l.b16 %v1268
    %v1793 = vunpack.c.l.b16 %v1269
    %v1794 = vunpack.c.l.b16 %v1270
    %v1795 = vunpack.c.l.b16 %v1271
    %v1796 = vunpack.c.l.b16 %v1272
    %v1797 = vpack.c.b16 %v1782, %v1781
    %v1798 = vpack.c.b16 %v1784, %v1783
    %v1799 = vpack.c.b16 %v1786, %v1785
    %v1800 = vpack.c.b16 %v1788, %v1787
    %v1801 = vpack.c.b16 %v1790, %v1789
    %v1802 = vpack.c.b16 %v1792, %v1791
    %v1803 = vpack.c.b16 %v1794, %v1793
    %v1804 = vpack.c.b16 %v1796, %v1795
    %1813 = vmatprep.subr.bf16.mxu0 0
    %1814 = vmatpush1.bf16.msra.mxu0 %v1797
    %1815 = vmatprep.subr.bf16.mxu0 0
    %1816 = vmatpush1.bf16.msra.mxu0 %v1798
    %1817 = vmatprep.subr.bf16.mxu0 0
    %1818 = vmatpush1.bf16.msra.mxu0 %v1799
    %1819 = vmatprep.subr.bf16.mxu0 0
    %1820 = vmatpush1.bf16.msra.mxu0 %v1800
    %1821 = vmatprep.subr.bf16.mxu0 0
    %1822 = vmatpush1.bf16.msra.mxu0 %v1801
    %1823 = vmatprep.subr.bf16.mxu0 0
    %1824 = vmatpush1.bf16.msra.mxu0 %v1802
    %1825 = vmatprep.subr.bf16.mxu0 0
    %1826 = vmatpush1.bf16.msra.mxu0 %v1803
    %1827 = vmatprep.subr.bf16.mxu0 0
    %1828 = vmatpush1.bf16.msra.mxu0 %v1804
    %1829 = vmatprep.subr.bf16.mxu0 0
    %1830 = vmatpush1.bf16.msra.mxu0 0
    %1831 = vmatprep.subr.bf16.mxu0 0
    %1832 = vmatpush1.bf16.msra.mxu0 0
    %1833 = vmatprep.subr.bf16.mxu0 0
    %1834 = vmatpush1.bf16.msra.mxu0 0
    %1835 = vmatprep.subr.bf16.mxu0 0
    %1836 = vmatpush1.bf16.msra.mxu0 0
    %1837 = vmatprep.subr.bf16.mxu0 0
    %1838 = vmatpush1.bf16.msra.mxu0 0
    %1839 = vmatprep.subr.bf16.mxu0 0
    %1840 = vmatpush1.bf16.msra.mxu0 0
    %1841 = vmatprep.subr.bf16.mxu0 0
    %1842 = vmatpush1.bf16.msra.mxu0 0
    %1843 = vmatprep.subr.bf16.mxu0 0
    %1844 = vmatpush1.bf16.msra.mxu0 0
    %1845 = vmatprep.mubr.bf16.mxu0 0
    %1846 = vmatmul.mubr.bf16.gmra.mrb[0].mxu0 %v1751
    %v1847 = vpop.f32.mrb[0].mxu0
    %v1848 = vadd.f32 %v1763, %v1847
    %v1849 = vpop.f32.mrb[0].mxu0
    %v1850 = vpop.f32.mrb[0].mxu0
    %v1851 = vadd.f32 %v1763, %v1850
    %v1852 = vpop.f32.mrb[0].mxu0
    %1853 = vmatprep.mubr.bf16.mxu0 0
    %1854 = vmatmul.mubr.bf16.gmra.mrb[0].mxu0 %v1752
    %v1855 = vpop.f32.mrb[0].mxu0
    %v1856 = vadd.f32 %v1763, %v1855
    %v1857 = vpop.f32.mrb[0].mxu0
    %v1858 = vpop.f32.mrb[0].mxu0
    %v1859 = vadd.f32 %v1763, %v1858
    %v1860 = vpop.f32.mrb[0].mxu0
    %1861 = vmatprep.mubr.bf16.mxu0 0
    %1862 = vmatmul.mubr.bf16.gmra.mrb[0].mxu0 %v1753
    %v1863 = vpop.f32.mrb[0].mxu0
    %v1864 = vadd.f32 %v1763, %v1863
    %v1865 = vpop.f32.mrb[0].mxu0
    %v1866 = vpop.f32.mrb[0].mxu0
    %v1867 = vadd.f32 %v1763, %v1866
    %v1868 = vpop.f32.mrb[0].mxu0
    %1869 = vmatprep.mubr.bf16.mxu0 0
    %1870 = vmatmul.mubr.bf16.gmra.mrb[0].mxu0 %v1754
    %v1871 = vpop.f32.mrb[0].mxu0
    %v1872 = vadd.f32 %v1763, %v1871
    %v1873 = vpop.f32.mrb[0].mxu0
    %v1874 = vpop.f32.mrb[0].mxu0
    %v1875 = vadd.f32 %v1763, %v1874
    %v1876 = vpop.f32.mrb[0].mxu0
    %1877 = vmatprep.mubr.bf16.mxu0 0
    %1878 = vmatmul.mubr.bf16.gmra.mrb[0].mxu0 %v1755
    %v1879 = vpop.f32.mrb[0].mxu0
    %v1880 = vadd.f32 %v1763, %v1879
    %v1881 = vpop.f32.mrb[0].mxu0
    %v1882 = vpop.f32.mrb[0].mxu0
    %v1883 = vadd.f32 %v1763, %v1882
    %v1884 = vpop.f32.mrb[0].mxu0
    %1885 = vmatprep.mubr.bf16.mxu0 0
    %1886 = vmatmul.mubr.bf16.gmra.mrb[0].mxu0 %v1756
    %v1887 = vpop.f32.mrb[0].mxu0
    %v1888 = vadd.f32 %v1763, %v1887
    %v1889 = vpop.f32.mrb[0].mxu0
    %v1890 = vpop.f32.mrb[0].mxu0
    %v1891 = vadd.f32 %v1763, %v1890
    %v1892 = vpop.f32.mrb[0].mxu0
    %1893 = vmatprep.mubr.bf16.mxu0 0
    %1894 = vmatmul.mubr.bf16.gmra.mrb[0].mxu0 %v1757
    %v1895 = vpop.f32.mrb[0].mxu0
    %v1896 = vadd.f32 %v1763, %v1895
    %v1897 = vpop.f32.mrb[0].mxu0
    %v1898 = vpop.f32.mrb[0].mxu0
    %v1899 = vadd.f32 %v1763, %v1898
    %v1900 = vpop.f32.mrb[0].mxu0
    %1901 = vmatprep.mubr.bf16.mxu0 0
    %1902 = vmatmul.mubr.bf16.gmra.mrb[0].mxu0 %v1758
    %v1903 = vpop.f32.mrb[0].mxu0
    %v1904 = vadd.f32 %v1763, %v1903
    %v1905 = vpop.f32.mrb[0].mxu0
    %v1906 = vpop.f32.mrb[0].mxu0
    %v1907 = vadd.f32 %v1763, %v1906
    %v1908 = vpop.f32.mrb[0].mxu0
    %1909 = vdwg.mxu0
    %v1910 = vld [vmem:[#allocation3] sm:$0xff]
    %v1911 = vld [vmem:[#allocation3 + $0x8] sm:$0xff]
    %v1912 = vld [vmem:[#allocation3 + $0x10] sm:$0xff]
    %v1913 = vld [vmem:[#allocation3 + $0x18] sm:$0xff]
    %v1914 = vld [vmem:[#allocation3 + $0x20] sm:$0xff]
    %v1915 = vld [vmem:[#allocation3 + $0x28] sm:$0xff]
    %v1916 = vld [vmem:[#allocation3 + $0x30] sm:$0xff]
    %v1917 = vld [vmem:[#allocation3 + $0x38] sm:$0xff]
    %v1918 = vld [vmem:[#allocation3 + $0x40] sm:$0xff]
    %v1919 = vld [vmem:[#allocation3 + $0x48] sm:$0xff]
    %v1920 = vld [vmem:[#allocation3 + $0x50] sm:$0xff]
    %v1921 = vld [vmem:[#allocation3 + $0x58] sm:$0xff]
    %v1922 = vld [vmem:[#allocation3 + $0x60] sm:$0xff]
    %v1923 = vld [vmem:[#allocation3 + $0x68] sm:$0xff]
    %v1924 = vld [vmem:[#allocation3 + $0x70] sm:$0xff]
    %v1925 = vld [vmem:[#allocation3 + $0x78] sm:$0xff]
    %v1926 = vadd.f32 %v1848, %v1910
    %v1927 = vadd.f32 %v1851, %v1911
    %v1928 = vadd.f32 %v1856, %v1912
    %v1929 = vadd.f32 %v1859, %v1913
    %v1930 = vadd.f32 %v1864, %v1914
    %v1931 = vadd.f32 %v1867, %v1915
    %v1932 = vadd.f32 %v1872, %v1916
    %v1933 = vadd.f32 %v1875, %v1917
    %v1934 = vadd.f32 %v1880, %v1918
    %v1935 = vadd.f32 %v1883, %v1919
    %v1936 = vadd.f32 %v1888, %v1920
    %v1937 = vadd.f32 %v1891, %v1921
    %v1938 = vadd.f32 %v1896, %v1922
    %v1939 = vadd.f32 %v1899, %v1923
    %v1940 = vadd.f32 %v1904, %v1924
    %v1941 = vadd.f32 %v1907, %v1925
    %1942 = vst [vmem:[#allocation20] sm:$0xff] %v1926
    %1943 = vst [vmem:[#allocation20 + $0x8] sm:$0xff] %v1927
    %1944 = vst [vmem:[#allocation20 + $0x10] sm:$0xff] %v1928
    %1945 = vst [vmem:[#allocation20 + $0x18] sm:$0xff] %v1929
    %1946 = vst [vmem:[#allocation20 + $0x20] sm:$0xff] %v1930
    %1947 = vst [vmem:[#allocation20 + $0x28] sm:$0xff] %v1931
    %1948 = vst [vmem:[#allocation20 + $0x30] sm:$0xff] %v1932
    %1949 = vst [vmem:[#allocation20 + $0x38] sm:$0xff] %v1933
    %1950 = vst [vmem:[#allocation20 + $0x40] sm:$0xff] %v1934
    %1951 = vst [vmem:[#allocation20 + $0x48] sm:$0xff] %v1935
    %1952 = vst [vmem:[#allocation20 + $0x50] sm:$0xff] %v1936
    %1953 = vst [vmem:[#allocation20 + $0x58] sm:$0xff] %v1937
    %1954 = vst [vmem:[#allocation20 + $0x60] sm:$0xff] %v1938
    %1955 = vst [vmem:[#allocation20 + $0x68] sm:$0xff] %v1939
    %1956 = vst [vmem:[#allocation20 + $0x70] sm:$0xff] %v1940
    %1957 = vst [vmem:[#allocation20 + $0x78] sm:$0xff] %v1941
    // Predicated region
    $region82: #{tpu_custom_call.1} parent=1 // pred_check
      _
    $region83: #{tpu_custom_call.1} parent=1 // pred_check_branch
      %1959 = sbr.rel (0) target = $region85
    $region84: #{tpu_custom_call.1} parent=1 // pred_region
      %s1961 = ssub.s32 2048, 2048
      %1962 = vsyncadd [#allocation5], %s1961
      %s1963 = sshll.u32 [#allocation20], 4
      %s1964 = int_to_ptr.vmem [resolvable:$true] %s1963
      %1969 = dma.vmem_to_hbm [thread:$0]  %s1964, 2048, %s10, [#allocation5], 128, 128, 8
    $region85: #{tpu_custom_call.1} parent=1 // pred_fallthru
      _
    // Predicated region
    $region86: #{tpu_custom_call.1} parent=1 // pred_check
      _
    $region87: #{tpu_custom_call.1} parent=1 // pred_check_branch
      %1971 = sbr.rel (0) target = $region89
    $region88: #{tpu_custom_call.1} parent=1 // pred_region
      %1972 = dma.done [#allocation5], 2048
    $region89: #{tpu_custom_call.1} parent=1 // pred_fallthru
      _
    %1973 = vsyncpa [#allocation4], 1
    %1974 = vsyncpa [#allocation7], 1
    %1975 = vsyncpa [#allocation10], 1
    %1976 = vsyncpa [#allocation13], 1
    %1977 = vsyncpa [#allocation16], 1
    %1978 = vsyncpa [#allocation19], 1
    %1979 = vsyncpa [#allocation5], 1

</llo_original>
